<compile_context>
chip_gen: v6e
topology: v6e:2x2x1
jax: 0.10.0
libtpu: 0.0.40
codegen_flags: <defaults>
</compile_context>

<pallas_src>
import functools
import math

import jax
import jax.numpy as jnp
from jax.experimental import pallas as pl
from jax.experimental.pallas import tpu as pltpu


def _pick_query_tile(n):
    """Largest 128-multiple tile <= 512 dividing n (lane dim of blocks), else full n."""
    for t in (512, 256, 128):
        if n % t == 0:
            return t
    return n


def _clamp_vmem(nbytes):
    # explicit budget, clamped to the v7x physical VMEM (64 MiB); never below the
    # 32 MiB scoped default so small problems keep the compiler's defaults.
    return int(max(32 << 20, min(64 << 20, nbytes)))


# --------------------------- Kernel 1: reducer + K/V -------------------------
def reducer_kv_kernel(patches_ref, w_red_ref, b_red_ref, ln_g_ref, ln_b_ref,
                      wk_t_ref, bk_ref, wv_ref, bv_ref,
                      k_ref, vt_ref):
    # Strided conv == patch matmul (bf16 operands, f32 accumulation).
    p = patches_ref[0]                                                     # (M, K) bf16
    y = jnp.dot(p, w_red_ref[...], preferred_element_type=jnp.float32)
    y = y + b_red_ref[...]                                                 # conv bias
    # LayerNorm over channels (f32).
    mu = jnp.mean(y, axis=-1, keepdims=True)
    var = jnp.mean(jnp.square(y - mu), axis=-1, keepdims=True)
    red = (y - mu) * jax.lax.rsqrt(var + 1e-5)
    red = (red * ln_g_ref[...] + ln_b_ref[...]).astype(jnp.bfloat16)       # (M, C)

    # K token-major: red @ Wk^T  (NN matmul).
    k = jnp.dot(red, wk_t_ref[...], preferred_element_type=jnp.float32)    # (M, C)
    k_ref[0] = (k + bk_ref[...]).astype(k_ref.dtype)
    # V feature-major: V^T = Wv @ red^T  (NT matmul, contraction over channels).
    vt = jax.lax.dot_general(wv_ref[...], red, (((1,), (1,)), ((), ())),
                             preferred_element_type=jnp.float32)           # (C, M)
    vt_ref[0] = (vt + bv_ref[...]).astype(vt_ref.dtype)


# ----------------------- Kernel 2: Q + attention + out -----------------------
def attn_kernel(num_heads, scale, x_ref, k_ref, vt_ref,
                wq_ref, bq_ref, wo_ref, bo_ref, o_ref):
    C = x_ref.shape[1]
    d = C // num_heads

    # Q^T = Wq @ x^T  (feature-major), bf16 operands, f32 accumulation.
    xt = x_ref[0]                                                          # (C, TN) bf16
    q_t = jnp.dot(wq_ref[...], xt, preferred_element_type=jnp.float32)     # (C, TN)
    q_t = ((q_t + bq_ref[...]) * scale).astype(jnp.bfloat16)

    k = k_ref[0]                                                           # (M, C) bf16
    vt = vt_ref[0]                                                         # (C, M) bf16

    # Per-head attention (static unroll; per-head live state is one (M, TN) score tile
    # and one (d, TN) context slice).  TODO(synk): if profiling shows vreg spills at
    # large TN/C, switch to lax.fori_loop(..., unroll=True) to bound live ranges.
    ctx_heads = []
    for h in range(num_heads):
        qh = q_t[h * d:(h + 1) * d, :]                                     # (d, TN)
        kh = k[:, h * d:(h + 1) * d]                                       # (M, d)
        vh = vt[h * d:(h + 1) * d, :]                                      # (d, M)
        s = jnp.dot(kh, qh, preferred_element_type=jnp.float32)            # (M, TN)
        s = s - jnp.max(s, axis=0, keepdims=True)                          # softmax over keys
        e = jnp.exp(s)
        pr = e * pl.reciprocal(jnp.sum(e, axis=0, keepdims=True), approx=True)
        ctx_heads.append(jnp.dot(vh, pr.astype(jnp.bfloat16),
                                 preferred_element_type=jnp.float32))      # (d, TN)

    # Single full-C out-projection on the concatenated heads (no per-head d-deep dots).
    ctx = jnp.concatenate(ctx_heads, axis=0).astype(jnp.bfloat16)          # (C, TN)
    out = jnp.dot(wo_ref[...], ctx, preferred_element_type=jnp.float32)    # (C, TN)
    # Lane-dense store: lane dim is TN (>=128 at realistic sequence lengths).
    o_ref[0] = (out + bo_ref[...]).astype(o_ref.dtype)


# --------------------------------- Wrapper ----------------------------------
@functools.partial(jax.jit, static_argnames=("reduction_ratio", "num_heads"))
def efficient_mha(x, conv_w, conv_b, ln_g, ln_b, in_proj_w, in_proj_b,
                  out_proj_w, out_proj_b, *, reduction_ratio, num_heads):
    B, C, Hs, Ws = x.shape
    r = reduction_ratio
    hr, wr = Hs // r, Ws // r
    M, N, K = hr * wr, Hs * Ws, C * r * r
    d = C // num_heads
    bf16 = jnp.bfloat16

    # Conv2d(k=r, stride=r) -> patch extraction (host-side layout glue), streamed as bf16.
    patches = (x.reshape(B, C, hr, r, wr, r)
                 .transpose(0, 2, 4, 1, 3, 5)
                 .reshape(B, M, K)).astype(bf16)
    # Feature-major tokens: (B, C, N) is a pure reshape of NCHW -> no transpose, bf16 stream.
    xt = x.reshape(B, C, N).astype(bf16)

    # Weights as bf16 MXU operands; biases / LN params stay f32.
    w_red = conv_w.reshape(C, K).T.astype(bf16)            # (K, C)
    wq = in_proj_w[:C].astype(bf16)                        # (C, C)  Q^T = Wq @ x^T
    wk_t = in_proj_w[C:2 * C].T.astype(bf16)               # (C, C)  K   = red @ Wk^T
    wv = in_proj_w[2 * C:].astype(bf16)                    # (C, C)  V^T = Wv @ red^T
    wo = out_proj_w.astype(bf16)                           # (C, C)  out^T = Wo @ ctx^T
    b_red = conv_b.reshape(1, C)
    bk = in_proj_b[C:2 * C].reshape(1, C)
    bv = in_proj_b[2 * C:].reshape(C, 1)
    bq = in_proj_b[:C].reshape(C, 1)
    bo = out_proj_b.reshape(C, 1)

    # ---- call 1: reducer conv + LN + K / V^T projections (grid over batch) ----
    red_vmem = _clamp_vmem(int(1.5 * (2 * M * K * 2 + 2 * K * C * 2 + 4 * C * C * 2
                                      + 4 * M * C * 2 + 3 * M * C * 4)) + (4 << 20))
    full = lambda b: (0, 0)
    k_red, v_red_t = pl.pallas_call(
        reducer_kv_kernel,
        out_shape=(jax.ShapeDtypeStruct((B, M, C), bf16),
                   jax.ShapeDtypeStruct((B, C, M), bf16)),
        grid=(B,),
        in_specs=[
            pl.BlockSpec((1, M, K), lambda b: (b, 0, 0)),   # patches
            pl.BlockSpec((K, C), full),                     # reducer conv weight
            pl.BlockSpec((1, C), full),                     # conv bias
            pl.BlockSpec((1, C), full),                     # LN gamma
            pl.BlockSpec((1, C), full),                     # LN beta
            pl.BlockSpec((C, C), full),                     # Wk^T
            pl.BlockSpec((1, C), full),                     # bk
            pl.BlockSpec((C, C), full),                     # Wv
            pl.BlockSpec((C, 1), full),                     # bv (feature-major)
        ],
        out_specs=(pl.BlockSpec((1, M, C), lambda b: (b, 0, 0)),
                   pl.BlockSpec((1, C, M), lambda b: (b, 0, 0))),
        compiler_params=pltpu.CompilerParams(
            dimension_semantics=("parallel",),
            vmem_limit_bytes=red_vmem),
    )(patches, w_red, b_red, ln_g.reshape(1, C), ln_b.reshape(1, C),
      wk_t, bk, wv, bv)

    # ---- call 2: Q projection + attention + out-projection, grid (batch, query tiles) ----
    TN = _pick_query_tile(N)
    attn_vmem = _clamp_vmem(int(1.5 * (
        2 * C * TN * 2            # x^T tile (bf16, double-buffered)
        + 2 * C * TN * 4          # out tile (double-buffered)
        + 4 * M * C * 2           # K and V^T (bf16, double-buffered)
        + 4 * C * C * 2           # Wq, Wo (bf16, double-buffered)
        + (2 * C * TN + 2 * M * TN) * 4   # live Q^T / ctx^T / score intermediates
    )) + (4 << 20))
    kern = functools.partial(attn_kernel, num_heads, 1.0 / math.sqrt(d))
    full2 = lambda b, q: (0, 0)

    out_fm = pl.pallas_call(
        kern,
        out_shape=jax.ShapeDtypeStruct((B, C, N), x.dtype),
        grid=(B, N // TN),
        in_specs=[
            pl.BlockSpec((1, C, TN), lambda b, q: (b, 0, q)),   # x^T query tile
            pl.BlockSpec((1, M, C), lambda b, q: (b, 0, 0)),    # K   (token-major, dense)
            pl.BlockSpec((1, C, M), lambda b, q: (b, 0, 0)),    # V^T (feature-major, dense)
            pl.BlockSpec((C, C), full2),                        # Wq
            pl.BlockSpec((C, 1), full2),                        # bq
            pl.BlockSpec((C, C), full2),                        # Wo
            pl.BlockSpec((C, 1), full2),                        # bo
        ],
        out_specs=pl.BlockSpec((1, C, TN), lambda b, q: (b, 0, q)),
        compiler_params=pltpu.CompilerParams(
            dimension_semantics=("parallel", "parallel"),       # megacore-safe, no scratch dep
            vmem_limit_bytes=attn_vmem),
    )(xt, k_red, v_red_t, wq, bq, wo, bo)

    # Feature-major output is already (B, C, N): only a reshape back to NCHW.
    return out_fm.reshape(B, C, Hs, Ws)


# ------------------------- Pure-JAX reference check -------------------------
def reference(x, conv_w, conv_b, ln_g, ln_b, in_w, in_b, out_w, out_b, r, heads):
    B, C, Hs, Ws = x.shape
    red = jax.lax.conv_general_dilated(
        x, conv_w, (r, r), 'VALID', dimension_numbers=('NCHW', 'OIHW', 'NCHW'))
    red = red + conv_b.reshape(1, C, 1, 1)
    red = red.transpose(0, 2, 3, 1)                                        # B,h',w',C
    mu = red.mean(-1, keepdims=True)
    var = red.var(-1, keepdims=True)
    red = (red - mu) / jnp.sqrt(var + 1e-5) * ln_g + ln_b
    red = red.reshape(B, -1, C)
    toks = x.reshape(B, C, -1).transpose(0, 2, 1)
    d = C // heads
    q = toks @ in_w[:C].T + in_b[:C]
    k = red @ in_w[C:2 * C].T + in_b[C:2 * C]
    v = red @ in_w[2 * C:].T + in_b[2 * C:]
    qh = q.reshape(B, -1, heads, d).transpose(0, 2, 1, 3)
    kh = k.reshape(B, -1, heads, d).transpose(0, 2, 1, 3)
    vh = v.reshape(B, -1, heads, d).transpose(0, 2, 1, 3)
    s = jnp.einsum('bhnd,bhmd->bhnm', qh, kh) / math.sqrt(d)
    p = jax.nn.softmax(s, axis=-1)
    o = jnp.einsum('bhnm,bhmd->bhnd', p, vh).transpose(0, 2, 1, 3).reshape(B, -1, C)
    o = o @ out_w.T + out_b
    return o.transpose(0, 2, 1).reshape(B, C, Hs, Ws)


if __name__ == "__main__":
    B, C, Hs, Ws = 2, 32, 8, 8
    r, heads = 2, 8

    key = jax.random.PRNGKey(0)
    k1, k2, k3, k4, k5, k6 = jax.random.split(key, 6)
    x = jax.random.normal(k1, (B, C, Hs, Ws), jnp.float32)
    conv_w = jax.random.normal(k2, (C, C, r, r), jnp.float32) / math.sqrt(C * r * r)
    conv_b = jax.random.normal(k3, (C,), jnp.float32) * 0.02
    ln_g = jnp.ones((C,), jnp.float32)
    ln_b = jnp.zeros((C,), jnp.float32)
    in_proj_w = jax.random.normal(k4, (3 * C, C), jnp.float32) / math.sqrt(C)
    in_proj_b = jax.random.normal(k5, (3 * C,), jnp.float32) * 0.02
    out_proj_w = jax.random.normal(k6, (C, C), jnp.float32) / math.sqrt(C)
    out_proj_b = jnp.zeros((C,), jnp.float32)

    out = efficient_mha(x, conv_w, conv_b, ln_g, ln_b, in_proj_w, in_proj_b,
                        out_proj_w, out_proj_b,
                        reduction_ratio=r, num_heads=heads)
    out = jax.block_until_ready(out)

    ref = reference(x, conv_w, conv_b, ln_g, ln_b, in_proj_w, in_proj_b,
                    out_proj_w, out_proj_b, r, heads)
    assert out.shape == (B, C, Hs, Ws)
    # bf16 matmul operands (f32 accumulation) + approx softmax reciprocal => looser tol
    # than pure-f32; semantics are unchanged.
    assert jnp.allclose(out, ref, rtol=5e-2, atol=5e-2), \
        f"max abs err = {jnp.max(jnp.abs(out - ref))}"
    print("KERNEL_OK")
</pallas_src>

<mosaic_0001>
module attributes {stable_mosaic.version = 11 : i64} {
  func.func @reducer_kv_kernel(%arg0: i32, %arg1: memref<1x16x128xbf16, #tpu.memory_space<vmem>>, %arg2: memref<128x32xbf16, #tpu.memory_space<vmem>>, %arg3: memref<1x32xf32, #tpu.memory_space<vmem>>, %arg4: memref<1x32xf32, #tpu.memory_space<vmem>>, %arg5: memref<1x32xf32, #tpu.memory_space<vmem>>, %arg6: memref<32x32xbf16, #tpu.memory_space<vmem>>, %arg7: memref<1x32xf32, #tpu.memory_space<vmem>>, %arg8: memref<32x32xbf16, #tpu.memory_space<vmem>>, %arg9: memref<32x1xf32, #tpu.memory_space<vmem>>, %arg10: memref<1x16x32xbf16, #tpu.memory_space<vmem>>, %arg11: memref<1x32x16xbf16, #tpu.memory_space<vmem>>) attributes {dimension_semantics = [#tpu.dimension_semantics<parallel>], iteration_bounds = array<i64: 2>, scalar_prefetch = 0 : i64, scratch_operands = 0 : i64, tpu.core_type = #tpu.core_type<tc>, window_params = [{transform_indices = @transform_0, window_bounds = array<i64: 1, 16, 128>}, {pipeline_mode = #tpu.pipeline_mode<synchronous>, transform_indices = @transform_1, window_bounds = array<i64: 128, 32>}, {pipeline_mode = #tpu.pipeline_mode<synchronous>, transform_indices = @transform_2, window_bounds = array<i64: 1, 32>}, {pipeline_mode = #tpu.pipeline_mode<synchronous>, transform_indices = @transform_3, window_bounds = array<i64: 1, 32>}, {pipeline_mode = #tpu.pipeline_mode<synchronous>, transform_indices = @transform_4, window_bounds = array<i64: 1, 32>}, {pipeline_mode = #tpu.pipeline_mode<synchronous>, transform_indices = @transform_5, window_bounds = array<i64: 32, 32>}, {pipeline_mode = #tpu.pipeline_mode<synchronous>, transform_indices = @transform_6, window_bounds = array<i64: 1, 32>}, {pipeline_mode = #tpu.pipeline_mode<synchronous>, transform_indices = @transform_7, window_bounds = array<i64: 32, 32>}, {pipeline_mode = #tpu.pipeline_mode<synchronous>, transform_indices = @transform_8, window_bounds = array<i64: 32, 1>}, {transform_indices = @transform_9, window_bounds = array<i64: 1, 16, 32>}, {transform_indices = @transform_10, window_bounds = array<i64: 1, 32, 16>}]} {
    %c0 = arith.constant 0 : index
    %c0_0 = arith.constant 0 : index
    %c0_1 = arith.constant 0 : index
    %0 = vector.load %arg1[%c0, %c0_0, %c0_1] : memref<1x16x128xbf16, #tpu.memory_space<vmem>>, vector<1x16x128xbf16>
    %1 = vector.shape_cast %0 : vector<1x16x128xbf16> to vector<16x128xbf16>
    %c0_2 = arith.constant 0 : index
    %c0_3 = arith.constant 0 : index
    %2 = vector.load %arg2[%c0_2, %c0_3] : memref<128x32xbf16, #tpu.memory_space<vmem>>, vector<128x32xbf16>
    %cst = arith.constant dense<0.000000e+00> : vector<16x32xf32>
    %3 = tpu.matmul %1, %2, %cst {dimension_numbers = #tpu.dot_dimension_numbers<[1], [0], [0], [1], [0, 0, 1, 1], [], []>} : vector<16x128xbf16>, vector<128x32xbf16>, vector<16x32xf32> -> vector<16x32xf32>
    %c0_4 = arith.constant 0 : index
    %c0_5 = arith.constant 0 : index
    %4 = vector.load %arg3[%c0_4, %c0_5] : memref<1x32xf32, #tpu.memory_space<vmem>>, vector<1x32xf32>
    %5 = vector.broadcast %4 : vector<1x32xf32> to vector<16x32xf32>
    %6 = arith.addf %3, %5 : vector<16x32xf32>
    %cst_6 = arith.constant dense<0.000000e+00> : vector<16xf32>
    %7 = vector.multi_reduction <add>, %6, %cst_6 [1] : vector<16x32xf32> to vector<16xf32>
    %8 = vector.shape_cast %7 : vector<16xf32> to vector<16x1xf32>
    %cst_7 = arith.constant 3.200000e+01 : f32
    %9 = vector.broadcast %cst_7 : f32 to vector<16x1xf32>
    %10 = arith.divf %8, %9 : vector<16x1xf32>
    %11 = vector.broadcast %10 : vector<16x1xf32> to vector<16x32xf32>
    %12 = arith.subf %6, %11 : vector<16x32xf32>
    %13 = arith.mulf %12, %12 : vector<16x32xf32>
    %cst_8 = arith.constant dense<0.000000e+00> : vector<16xf32>
    %14 = vector.multi_reduction <add>, %13, %cst_8 [1] : vector<16x32xf32> to vector<16xf32>
    %15 = vector.shape_cast %14 : vector<16xf32> to vector<16x1xf32>
    %cst_9 = arith.constant 3.200000e+01 : f32
    %16 = vector.broadcast %cst_9 : f32 to vector<16x1xf32>
    %17 = arith.divf %15, %16 : vector<16x1xf32>
    %18 = vector.broadcast %10 : vector<16x1xf32> to vector<16x32xf32>
    %19 = arith.subf %6, %18 : vector<16x32xf32>
    %cst_10 = arith.constant 9.99999974E-6 : f32
    %20 = vector.broadcast %cst_10 : f32 to vector<16x1xf32>
    %21 = arith.addf %17, %20 : vector<16x1xf32>
    %22 = math.rsqrt %21 : vector<16x1xf32>
    %23 = vector.broadcast %22 : vector<16x1xf32> to vector<16x32xf32>
    %24 = arith.mulf %19, %23 : vector<16x32xf32>
    %c0_11 = arith.constant 0 : index
    %c0_12 = arith.constant 0 : index
    %25 = vector.load %arg4[%c0_11, %c0_12] : memref<1x32xf32, #tpu.memory_space<vmem>>, vector<1x32xf32>
    %26 = vector.broadcast %25 : vector<1x32xf32> to vector<16x32xf32>
    %27 = arith.mulf %24, %26 : vector<16x32xf32>
    %c0_13 = arith.constant 0 : index
    %c0_14 = arith.constant 0 : index
    %28 = vector.load %arg5[%c0_13, %c0_14] : memref<1x32xf32, #tpu.memory_space<vmem>>, vector<1x32xf32>
    %29 = vector.broadcast %28 : vector<1x32xf32> to vector<16x32xf32>
    %30 = arith.addf %27, %29 : vector<16x32xf32>
    %31 = arith.truncf %30 : vector<16x32xf32> to vector<16x32xbf16>
    %c0_15 = arith.constant 0 : index
    %c0_16 = arith.constant 0 : index
    %32 = vector.load %arg6[%c0_15, %c0_16] : memref<32x32xbf16, #tpu.memory_space<vmem>>, vector<32x32xbf16>
    %cst_17 = arith.constant dense<0.000000e+00> : vector<16x32xf32>
    %33 = tpu.matmul %31, %32, %cst_17 {dimension_numbers = #tpu.dot_dimension_numbers<[1], [0], [0], [1], [0, 0, 1, 1], [], []>} : vector<16x32xbf16>, vector<32x32xbf16>, vector<16x32xf32> -> vector<16x32xf32>
    %c0_18 = arith.constant 0 : index
    %c0_19 = arith.constant 0 : index
    %34 = vector.load %arg7[%c0_18, %c0_19] : memref<1x32xf32, #tpu.memory_space<vmem>>, vector<1x32xf32>
    %35 = vector.broadcast %34 : vector<1x32xf32> to vector<16x32xf32>
    %36 = arith.addf %33, %35 : vector<16x32xf32>
    %37 = arith.truncf %36 : vector<16x32xf32> to vector<16x32xbf16>
    %c0_20 = arith.constant 0 : index
    %c0_21 = arith.constant 0 : index
    %c0_22 = arith.constant 0 : index
    %38 = vector.load %arg10[%c0_20, %c0_21, %c0_22] : memref<1x16x32xbf16, #tpu.memory_space<vmem>>, vector<1x16x32xbf16>
    %39 = vector.shape_cast %38 : vector<1x16x32xbf16> to vector<16x32xbf16>
    %40 = vector.shape_cast %37 : vector<16x32xbf16> to vector<1x16x32xbf16>
    tpu.vector_store %arg10[%c0_20, %c0_21, %c0_22], %40 {strides = array<i32>} : memref<1x16x32xbf16, #tpu.memory_space<vmem>>, vector<1x16x32xbf16>,
    %c0_23 = arith.constant 0 : index
    %c0_24 = arith.constant 0 : index
    %41 = vector.load %arg8[%c0_23, %c0_24] : memref<32x32xbf16, #tpu.memory_space<vmem>>, vector<32x32xbf16>
    %cst_25 = arith.constant dense<0.000000e+00> : vector<32x16xf32>
    %42 = tpu.matmul %41, %31, %cst_25 {dimension_numbers = #tpu.dot_dimension_numbers<[1], [1], [0], [0], [0, 0, 1, 0], [], []>} : vector<32x32xbf16>, vector<16x32xbf16>, vector<32x16xf32> -> vector<32x16xf32>
    %c0_26 = arith.constant 0 : index
    %c0_27 = arith.constant 0 : index
    %43 = vector.load %arg9[%c0_26, %c0_27] : memref<32x1xf32, #tpu.memory_space<vmem>>, vector<32x1xf32>
    %44 = vector.broadcast %43 : vector<32x1xf32> to vector<32x16xf32>
    %45 = arith.addf %42, %44 : vector<32x16xf32>
    %46 = arith.truncf %45 : vector<32x16xf32> to vector<32x16xbf16>
    %c0_28 = arith.constant 0 : index
    %c0_29 = arith.constant 0 : index
    %c0_30 = arith.constant 0 : index
    %47 = vector.load %arg11[%c0_28, %c0_29, %c0_30] : memref<1x32x16xbf16, #tpu.memory_space<vmem>>, vector<1x32x16xbf16>
    %48 = vector.shape_cast %47 : vector<1x32x16xbf16> to vector<32x16xbf16>
    %49 = vector.shape_cast %46 : vector<32x16xbf16> to vector<1x32x16xbf16>
    tpu.vector_store %arg11[%c0_28, %c0_29, %c0_30], %49 {strides = array<i32>} : memref<1x32x16xbf16, #tpu.memory_space<vmem>>, vector<1x32x16xbf16>,
    return
  }
  func.func @transform_0(%arg0: i32) -> (i32, i32, i32) {
    %c0_i32 = arith.constant 0 : i32
    %c0_i32_0 = arith.constant 0 : i32
    %c0_i32_1 = arith.constant 0 : i32
    return %arg0, %c0_i32, %c0_i32_0 : i32, i32, i32
  }
  func.func @transform_1(%arg0: i32) -> (i32, i32) {
    %c0_i32 = arith.constant 0 : i32
    %c0_i32_0 = arith.constant 0 : i32
    %c0_i32_1 = arith.constant 0 : i32
    return %c0_i32, %c0_i32_0 : i32, i32
  }
  func.func @transform_2(%arg0: i32) -> (i32, i32) {
    %c0_i32 = arith.constant 0 : i32
    %c0_i32_0 = arith.constant 0 : i32
    %c0_i32_1 = arith.constant 0 : i32
    return %c0_i32, %c0_i32_0 : i32, i32
  }
  func.func @transform_3(%arg0: i32) -> (i32, i32) {
    %c0_i32 = arith.constant 0 : i32
    %c0_i32_0 = arith.constant 0 : i32
    %c0_i32_1 = arith.constant 0 : i32
    return %c0_i32, %c0_i32_0 : i32, i32
  }
  func.func @transform_4(%arg0: i32) -> (i32, i32) {
    %c0_i32 = arith.constant 0 : i32
    %c0_i32_0 = arith.constant 0 : i32
    %c0_i32_1 = arith.constant 0 : i32
    return %c0_i32, %c0_i32_0 : i32, i32
  }
  func.func @transform_5(%arg0: i32) -> (i32, i32) {
    %c0_i32 = arith.constant 0 : i32
    %c0_i32_0 = arith.constant 0 : i32
    %c0_i32_1 = arith.constant 0 : i32
    return %c0_i32, %c0_i32_0 : i32, i32
  }
  func.func @transform_6(%arg0: i32) -> (i32, i32) {
    %c0_i32 = arith.constant 0 : i32
    %c0_i32_0 = arith.constant 0 : i32
    %c0_i32_1 = arith.constant 0 : i32
    return %c0_i32, %c0_i32_0 : i32, i32
  }
  func.func @transform_7(%arg0: i32) -> (i32, i32) {
    %c0_i32 = arith.constant 0 : i32
    %c0_i32_0 = arith.constant 0 : i32
    %c0_i32_1 = arith.constant 0 : i32
    return %c0_i32, %c0_i32_0 : i32, i32
  }
  func.func @transform_8(%arg0: i32) -> (i32, i32) {
    %c0_i32 = arith.constant 0 : i32
    %c0_i32_0 = arith.constant 0 : i32
    %c0_i32_1 = arith.constant 0 : i32
    return %c0_i32, %c0_i32_0 : i32, i32
  }
  func.func @transform_9(%arg0: i32) -> (i32, i32, i32) {
    %c0_i32 = arith.constant 0 : i32
    %c0_i32_0 = arith.constant 0 : i32
    %c0_i32_1 = arith.constant 0 : i32
    return %arg0, %c0_i32, %c0_i32_0 : i32, i32, i32
  }
  func.func @transform_10(%arg0: i32) -> (i32, i32, i32) {
    %c0_i32 = arith.constant 0 : i32
    %c0_i32_0 = arith.constant 0 : i32
    %c0_i32_1 = arith.constant 0 : i32
    return %arg0, %c0_i32, %c0_i32_0 : i32, i32, i32
  }
}

module attributes {stable_mosaic.version = 11 : i64} {
  func.func @attn_kernel(%arg0: i32, %arg1: i32, %arg2: memref<1x32x64xbf16, #tpu.memory_space<vmem>>, %arg3: memref<1x16x32xbf16, #tpu.memory_space<vmem>>, %arg4: memref<1x32x16xbf16, #tpu.memory_space<vmem>>, %arg5: memref<32x32xbf16, #tpu.memory_space<vmem>>, %arg6: memref<32x1xf32, #tpu.memory_space<vmem>>, %arg7: memref<32x32xbf16, #tpu.memory_space<vmem>>, %arg8: memref<32x1xf32, #tpu.memory_space<vmem>>, %arg9: memref<1x32x64xf32, #tpu.memory_space<vmem>>) attributes {dimension_semantics = [#tpu.dimension_semantics<parallel>, #tpu.dimension_semantics<parallel>], iteration_bounds = array<i64: 2, 1>, scalar_prefetch = 0 : i64, scratch_operands = 0 : i64, tpu.core_type = #tpu.core_type<tc>, window_params = [{transform_indices = @transform_0, window_bounds = array<i64: 1, 32, 64>}, {transform_indices = @transform_1, window_bounds = array<i64: 1, 16, 32>}, {transform_indices = @transform_2, window_bounds = array<i64: 1, 32, 16>}, {pipeline_mode = #tpu.pipeline_mode<synchronous>, transform_indices = @transform_3, window_bounds = array<i64: 32, 32>}, {pipeline_mode = #tpu.pipeline_mode<synchronous>, transform_indices = @transform_4, window_bounds = array<i64: 32, 1>}, {pipeline_mode = #tpu.pipeline_mode<synchronous>, transform_indices = @transform_5, window_bounds = array<i64: 32, 32>}, {pipeline_mode = #tpu.pipeline_mode<synchronous>, transform_indices = @transform_6, window_bounds = array<i64: 32, 1>}, {transform_indices = @transform_7, window_bounds = array<i64: 1, 32, 64>}]} {
    %c0 = arith.constant 0 : index
    %c0_0 = arith.constant 0 : index
    %c0_1 = arith.constant 0 : index
    %0 = vector.load %arg2[%c0, %c0_0, %c0_1] : memref<1x32x64xbf16, #tpu.memory_space<vmem>>, vector<1x32x64xbf16>
    %1 = vector.shape_cast %0 : vector<1x32x64xbf16> to vector<32x64xbf16>
    %c0_2 = arith.constant 0 : index
    %c0_3 = arith.constant 0 : index
    %2 = vector.load %arg5[%c0_2, %c0_3] : memref<32x32xbf16, #tpu.memory_space<vmem>>, vector<32x32xbf16>
    %cst = arith.constant dense<0.000000e+00> : vector<32x64xf32>
    %3 = tpu.matmul %2, %1, %cst {dimension_numbers = #tpu.dot_dimension_numbers<[1], [0], [0], [1], [0, 0, 1, 1], [], []>} : vector<32x32xbf16>, vector<32x64xbf16>, vector<32x64xf32> -> vector<32x64xf32>
    %c0_4 = arith.constant 0 : index
    %c0_5 = arith.constant 0 : index
    %4 = vector.load %arg6[%c0_4, %c0_5] : memref<32x1xf32, #tpu.memory_space<vmem>>, vector<32x1xf32>
    %5 = vector.broadcast %4 : vector<32x1xf32> to vector<32x64xf32>
    %6 = arith.addf %3, %5 : vector<32x64xf32>
    %cst_6 = arith.constant 5.000000e-01 : f32
    %7 = vector.broadcast %cst_6 : f32 to vector<32x64xf32>
    %8 = arith.mulf %6, %7 : vector<32x64xf32>
    %9 = arith.truncf %8 : vector<32x64xf32> to vector<32x64xbf16>
    %c0_7 = arith.constant 0 : index
    %c0_8 = arith.constant 0 : index
    %c0_9 = arith.constant 0 : index
    %10 = vector.load %arg3[%c0_7, %c0_8, %c0_9] : memref<1x16x32xbf16, #tpu.memory_space<vmem>>, vector<1x16x32xbf16>
    %11 = vector.shape_cast %10 : vector<1x16x32xbf16> to vector<16x32xbf16>
    %c0_10 = arith.constant 0 : index
    %c0_11 = arith.constant 0 : index
    %c0_12 = arith.constant 0 : index
    %12 = vector.load %arg4[%c0_10, %c0_11, %c0_12] : memref<1x32x16xbf16, #tpu.memory_space<vmem>>, vector<1x32x16xbf16>
    %13 = vector.shape_cast %12 : vector<1x32x16xbf16> to vector<32x16xbf16>
    %14 = vector.extract_strided_slice %9 {offsets = [0, 0], sizes = [4, 64], strides = [1, 1]} : vector<32x64xbf16> to vector<4x64xbf16>
    %15 = vector.extract_strided_slice %11 {offsets = [0, 0], sizes = [16, 4], strides = [1, 1]} : vector<16x32xbf16> to vector<16x4xbf16>
    %16 = vector.extract_strided_slice %13 {offsets = [0, 0], sizes = [4, 16], strides = [1, 1]} : vector<32x16xbf16> to vector<4x16xbf16>
    %cst_13 = arith.constant dense<0.000000e+00> : vector<16x64xf32>
    %17 = tpu.matmul %15, %14, %cst_13 {dimension_numbers = #tpu.dot_dimension_numbers<[1], [0], [0], [1], [0, 0, 1, 1], [], []>} : vector<16x4xbf16>, vector<4x64xbf16>, vector<16x64xf32> -> vector<16x64xf32>
    %cst_14 = arith.constant dense<0xFF800000> : vector<64xf32>
    %18 = vector.multi_reduction <maximumf>, %17, %cst_14 [0] : vector<16x64xf32> to vector<64xf32>
    %19 = vector.shape_cast %18 : vector<64xf32> to vector<1x64xf32>
    %20 = vector.broadcast %19 : vector<1x64xf32> to vector<16x64xf32>
    %21 = arith.subf %17, %20 : vector<16x64xf32>
    %22 = math.exp %21 : vector<16x64xf32>
    %cst_15 = arith.constant dense<0.000000e+00> : vector<64xf32>
    %23 = vector.multi_reduction <add>, %22, %cst_15 [0] : vector<16x64xf32> to vector<64xf32>
    %24 = vector.shape_cast %23 : vector<64xf32> to vector<1x64xf32>
    %25 = tpu.reciprocal %24 {approx = true} : vector<1x64xf32> -> vector<1x64xf32>
    %26 = vector.broadcast %25 : vector<1x64xf32> to vector<16x64xf32>
    %27 = arith.mulf %22, %26 : vector<16x64xf32>
    %28 = arith.truncf %27 : vector<16x64xf32> to vector<16x64xbf16>
    %cst_16 = arith.constant dense<0.000000e+00> : vector<4x64xf32>
    %29 = tpu.matmul %16, %28, %cst_16 {dimension_numbers = #tpu.dot_dimension_numbers<[1], [0], [0], [1], [0, 0, 1, 1], [], []>} : vector<4x16xbf16>, vector<16x64xbf16>, vector<4x64xf32> -> vector<4x64xf32>
    %30 = vector.extract_strided_slice %9 {offsets = [4, 0], sizes = [4, 64], strides = [1, 1]} : vector<32x64xbf16> to vector<4x64xbf16>
    %31 = vector.extract_strided_slice %11 {offsets = [0, 4], sizes = [16, 4], strides = [1, 1]} : vector<16x32xbf16> to vector<16x4xbf16>
    %32 = vector.extract_strided_slice %13 {offsets = [4, 0], sizes = [4, 16], strides = [1, 1]} : vector<32x16xbf16> to vector<4x16xbf16>
    %cst_17 = arith.constant dense<0.000000e+00> : vector<16x64xf32>
    %33 = tpu.matmul %31, %30, %cst_17 {dimension_numbers = #tpu.dot_dimension_numbers<[1], [0], [0], [1], [0, 0, 1, 1], [], []>} : vector<16x4xbf16>, vector<4x64xbf16>, vector<16x64xf32> -> vector<16x64xf32>
    %cst_18 = arith.constant dense<0xFF800000> : vector<64xf32>
    %34 = vector.multi_reduction <maximumf>, %33, %cst_18 [0] : vector<16x64xf32> to vector<64xf32>
    %35 = vector.shape_cast %34 : vector<64xf32> to vector<1x64xf32>
    %36 = vector.broadcast %35 : vector<1x64xf32> to vector<16x64xf32>
    %37 = arith.subf %33, %36 : vector<16x64xf32>
    %38 = math.exp %37 : vector<16x64xf32>
    %cst_19 = arith.constant dense<0.000000e+00> : vector<64xf32>
    %39 = vector.multi_reduction <add>, %38, %cst_19 [0] : vector<16x64xf32> to vector<64xf32>
    %40 = vector.shape_cast %39 : vector<64xf32> to vector<1x64xf32>
    %41 = tpu.reciprocal %40 {approx = true} : vector<1x64xf32> -> vector<1x64xf32>
    %42 = vector.broadcast %41 : vector<1x64xf32> to vector<16x64xf32>
    %43 = arith.mulf %38, %42 : vector<16x64xf32>
    %44 = arith.truncf %43 : vector<16x64xf32> to vector<16x64xbf16>
    %cst_20 = arith.constant dense<0.000000e+00> : vector<4x64xf32>
    %45 = tpu.matmul %32, %44, %cst_20 {dimension_numbers = #tpu.dot_dimension_numbers<[1], [0], [0], [1], [0, 0, 1, 1], [], []>} : vector<4x16xbf16>, vector<16x64xbf16>, vector<4x64xf32> -> vector<4x64xf32>
    %46 = vector.extract_strided_slice %9 {offsets = [8, 0], sizes = [4, 64], strides = [1, 1]} : vector<32x64xbf16> to vector<4x64xbf16>
    %47 = vector.extract_strided_slice %11 {offsets = [0, 8], sizes = [16, 4], strides = [1, 1]} : vector<16x32xbf16> to vector<16x4xbf16>
    %48 = vector.extract_strided_slice %13 {offsets = [8, 0], sizes = [4, 16], strides = [1, 1]} : vector<32x16xbf16> to vector<4x16xbf16>
    %cst_21 = arith.constant dense<0.000000e+00> : vector<16x64xf32>
    %49 = tpu.matmul %47, %46, %cst_21 {dimension_numbers = #tpu.dot_dimension_numbers<[1], [0], [0], [1], [0, 0, 1, 1], [], []>} : vector<16x4xbf16>, vector<4x64xbf16>, vector<16x64xf32> -> vector<16x64xf32>
    %cst_22 = arith.constant dense<0xFF800000> : vector<64xf32>
    %50 = vector.multi_reduction <maximumf>, %49, %cst_22 [0] : vector<16x64xf32> to vector<64xf32>
    %51 = vector.shape_cast %50 : vector<64xf32> to vector<1x64xf32>
    %52 = vector.broadcast %51 : vector<1x64xf32> to vector<16x64xf32>
    %53 = arith.subf %49, %52 : vector<16x64xf32>
    %54 = math.exp %53 : vector<16x64xf32>
    %cst_23 = arith.constant dense<0.000000e+00> : vector<64xf32>
    %55 = vector.multi_reduction <add>, %54, %cst_23 [0] : vector<16x64xf32> to vector<64xf32>
    %56 = vector.shape_cast %55 : vector<64xf32> to vector<1x64xf32>
    %57 = tpu.reciprocal %56 {approx = true} : vector<1x64xf32> -> vector<1x64xf32>
    %58 = vector.broadcast %57 : vector<1x64xf32> to vector<16x64xf32>
    %59 = arith.mulf %54, %58 : vector<16x64xf32>
    %60 = arith.truncf %59 : vector<16x64xf32> to vector<16x64xbf16>
    %cst_24 = arith.constant dense<0.000000e+00> : vector<4x64xf32>
    %61 = tpu.matmul %48, %60, %cst_24 {dimension_numbers = #tpu.dot_dimension_numbers<[1], [0], [0], [1], [0, 0, 1, 1], [], []>} : vector<4x16xbf16>, vector<16x64xbf16>, vector<4x64xf32> -> vector<4x64xf32>
    %62 = vector.extract_strided_slice %9 {offsets = [12, 0], sizes = [4, 64], strides = [1, 1]} : vector<32x64xbf16> to vector<4x64xbf16>
    %63 = vector.extract_strided_slice %11 {offsets = [0, 12], sizes = [16, 4], strides = [1, 1]} : vector<16x32xbf16> to vector<16x4xbf16>
    %64 = vector.extract_strided_slice %13 {offsets = [12, 0], sizes = [4, 16], strides = [1, 1]} : vector<32x16xbf16> to vector<4x16xbf16>
    %cst_25 = arith.constant dense<0.000000e+00> : vector<16x64xf32>
    %65 = tpu.matmul %63, %62, %cst_25 {dimension_numbers = #tpu.dot_dimension_numbers<[1], [0], [0], [1], [0, 0, 1, 1], [], []>} : vector<16x4xbf16>, vector<4x64xbf16>, vector<16x64xf32> -> vector<16x64xf32>
    %cst_26 = arith.constant dense<0xFF800000> : vector<64xf32>
    %66 = vector.multi_reduction <maximumf>, %65, %cst_26 [0] : vector<16x64xf32> to vector<64xf32>
    %67 = vector.shape_cast %66 : vector<64xf32> to vector<1x64xf32>
    %68 = vector.broadcast %67 : vector<1x64xf32> to vector<16x64xf32>
    %69 = arith.subf %65, %68 : vector<16x64xf32>
    %70 = math.exp %69 : vector<16x64xf32>
    %cst_27 = arith.constant dense<0.000000e+00> : vector<64xf32>
    %71 = vector.multi_reduction <add>, %70, %cst_27 [0] : vector<16x64xf32> to vector<64xf32>
    %72 = vector.shape_cast %71 : vector<64xf32> to vector<1x64xf32>
    %73 = tpu.reciprocal %72 {approx = true} : vector<1x64xf32> -> vector<1x64xf32>
    %74 = vector.broadcast %73 : vector<1x64xf32> to vector<16x64xf32>
    %75 = arith.mulf %70, %74 : vector<16x64xf32>
    %76 = arith.truncf %75 : vector<16x64xf32> to vector<16x64xbf16>
    %cst_28 = arith.constant dense<0.000000e+00> : vector<4x64xf32>
    %77 = tpu.matmul %64, %76, %cst_28 {dimension_numbers = #tpu.dot_dimension_numbers<[1], [0], [0], [1], [0, 0, 1, 1], [], []>} : vector<4x16xbf16>, vector<16x64xbf16>, vector<4x64xf32> -> vector<4x64xf32>
    %78 = vector.extract_strided_slice %9 {offsets = [16, 0], sizes = [4, 64], strides = [1, 1]} : vector<32x64xbf16> to vector<4x64xbf16>
    %79 = vector.extract_strided_slice %11 {offsets = [0, 16], sizes = [16, 4], strides = [1, 1]} : vector<16x32xbf16> to vector<16x4xbf16>
    %80 = vector.extract_strided_slice %13 {offsets = [16, 0], sizes = [4, 16], strides = [1, 1]} : vector<32x16xbf16> to vector<4x16xbf16>
    %cst_29 = arith.constant dense<0.000000e+00> : vector<16x64xf32>
    %81 = tpu.matmul %79, %78, %cst_29 {dimension_numbers = #tpu.dot_dimension_numbers<[1], [0], [0], [1], [0, 0, 1, 1], [], []>} : vector<16x4xbf16>, vector<4x64xbf16>, vector<16x64xf32> -> vector<16x64xf32>
    %cst_30 = arith.constant dense<0xFF800000> : vector<64xf32>
    %82 = vector.multi_reduction <maximumf>, %81, %cst_30 [0] : vector<16x64xf32> to vector<64xf32>
    %83 = vector.shape_cast %82 : vector<64xf32> to vector<1x64xf32>
    %84 = vector.broadcast %83 : vector<1x64xf32> to vector<16x64xf32>
    %85 = arith.subf %81, %84 : vector<16x64xf32>
    %86 = math.exp %85 : vector<16x64xf32>
    %cst_31 = arith.constant dense<0.000000e+00> : vector<64xf32>
    %87 = vector.multi_reduction <add>, %86, %cst_31 [0] : vector<16x64xf32> to vector<64xf32>
    %88 = vector.shape_cast %87 : vector<64xf32> to vector<1x64xf32>
    %89 = tpu.reciprocal %88 {approx = true} : vector<1x64xf32> -> vector<1x64xf32>
    %90 = vector.broadcast %89 : vector<1x64xf32> to vector<16x64xf32>
    %91 = arith.mulf %86, %90 : vector<16x64xf32>
    %92 = arith.truncf %91 : vector<16x64xf32> to vector<16x64xbf16>
    %cst_32 = arith.constant dense<0.000000e+00> : vector<4x64xf32>
    %93 = tpu.matmul %80, %92, %cst_32 {dimension_numbers = #tpu.dot_dimension_numbers<[1], [0], [0], [1], [0, 0, 1, 1], [], []>} : vector<4x16xbf16>, vector<16x64xbf16>, vector<4x64xf32> -> vector<4x64xf32>
    %94 = vector.extract_strided_slice %9 {offsets = [20, 0], sizes = [4, 64], strides = [1, 1]} : vector<32x64xbf16> to vector<4x64xbf16>
    %95 = vector.extract_strided_slice %11 {offsets = [0, 20], sizes = [16, 4], strides = [1, 1]} : vector<16x32xbf16> to vector<16x4xbf16>
    %96 = vector.extract_strided_slice %13 {offsets = [20, 0], sizes = [4, 16], strides = [1, 1]} : vector<32x16xbf16> to vector<4x16xbf16>
    %cst_33 = arith.constant dense<0.000000e+00> : vector<16x64xf32>
    %97 = tpu.matmul %95, %94, %cst_33 {dimension_numbers = #tpu.dot_dimension_numbers<[1], [0], [0], [1], [0, 0, 1, 1], [], []>} : vector<16x4xbf16>, vector<4x64xbf16>, vector<16x64xf32> -> vector<16x64xf32>
    %cst_34 = arith.constant dense<0xFF800000> : vector<64xf32>
    %98 = vector.multi_reduction <maximumf>, %97, %cst_34 [0] : vector<16x64xf32> to vector<64xf32>
    %99 = vector.shape_cast %98 : vector<64xf32> to vector<1x64xf32>
    %100 = vector.broadcast %99 : vector<1x64xf32> to vector<16x64xf32>
    %101 = arith.subf %97, %100 : vector<16x64xf32>
    %102 = math.exp %101 : vector<16x64xf32>
    %cst_35 = arith.constant dense<0.000000e+00> : vector<64xf32>
    %103 = vector.multi_reduction <add>, %102, %cst_35 [0] : vector<16x64xf32> to vector<64xf32>
    %104 = vector.shape_cast %103 : vector<64xf32> to vector<1x64xf32>
    %105 = tpu.reciprocal %104 {approx = true} : vector<1x64xf32> -> vector<1x64xf32>
    %106 = vector.broadcast %105 : vector<1x64xf32> to vector<16x64xf32>
    %107 = arith.mulf %102, %106 : vector<16x64xf32>
    %108 = arith.truncf %107 : vector<16x64xf32> to vector<16x64xbf16>
    %cst_36 = arith.constant dense<0.000000e+00> : vector<4x64xf32>
    %109 = tpu.matmul %96, %108, %cst_36 {dimension_numbers = #tpu.dot_dimension_numbers<[1], [0], [0], [1], [0, 0, 1, 1], [], []>} : vector<4x16xbf16>, vector<16x64xbf16>, vector<4x64xf32> -> vector<4x64xf32>
    %110 = vector.extract_strided_slice %9 {offsets = [24, 0], sizes = [4, 64], strides = [1, 1]} : vector<32x64xbf16> to vector<4x64xbf16>
    %111 = vector.extract_strided_slice %11 {offsets = [0, 24], sizes = [16, 4], strides = [1, 1]} : vector<16x32xbf16> to vector<16x4xbf16>
    %112 = vector.extract_strided_slice %13 {offsets = [24, 0], sizes = [4, 16], strides = [1, 1]} : vector<32x16xbf16> to vector<4x16xbf16>
    %cst_37 = arith.constant dense<0.000000e+00> : vector<16x64xf32>
    %113 = tpu.matmul %111, %110, %cst_37 {dimension_numbers = #tpu.dot_dimension_numbers<[1], [0], [0], [1], [0, 0, 1, 1], [], []>} : vector<16x4xbf16>, vector<4x64xbf16>, vector<16x64xf32> -> vector<16x64xf32>
    %cst_38 = arith.constant dense<0xFF800000> : vector<64xf32>
    %114 = vector.multi_reduction <maximumf>, %113, %cst_38 [0] : vector<16x64xf32> to vector<64xf32>
    %115 = vector.shape_cast %114 : vector<64xf32> to vector<1x64xf32>
    %116 = vector.broadcast %115 : vector<1x64xf32> to vector<16x64xf32>
    %117 = arith.subf %113, %116 : vector<16x64xf32>
    %118 = math.exp %117 : vector<16x64xf32>
    %cst_39 = arith.constant dense<0.000000e+00> : vector<64xf32>
    %119 = vector.multi_reduction <add>, %118, %cst_39 [0] : vector<16x64xf32> to vector<64xf32>
    %120 = vector.shape_cast %119 : vector<64xf32> to vector<1x64xf32>
    %121 = tpu.reciprocal %120 {approx = true} : vector<1x64xf32> -> vector<1x64xf32>
    %122 = vector.broadcast %121 : vector<1x64xf32> to vector<16x64xf32>
    %123 = arith.mulf %118, %122 : vector<16x64xf32>
    %124 = arith.truncf %123 : vector<16x64xf32> to vector<16x64xbf16>
    %cst_40 = arith.constant dense<0.000000e+00> : vector<4x64xf32>
    %125 = tpu.matmul %112, %124, %cst_40 {dimension_numbers = #tpu.dot_dimension_numbers<[1], [0], [0], [1], [0, 0, 1, 1], [], []>} : vector<4x16xbf16>, vector<16x64xbf16>, vector<4x64xf32> -> vector<4x64xf32>
    %126 = vector.extract_strided_slice %9 {offsets = [28, 0], sizes = [4, 64], strides = [1, 1]} : vector<32x64xbf16> to vector<4x64xbf16>
    %127 = vector.extract_strided_slice %11 {offsets = [0, 28], sizes = [16, 4], strides = [1, 1]} : vector<16x32xbf16> to vector<16x4xbf16>
    %128 = vector.extract_strided_slice %13 {offsets = [28, 0], sizes = [4, 16], strides = [1, 1]} : vector<32x16xbf16> to vector<4x16xbf16>
    %cst_41 = arith.constant dense<0.000000e+00> : vector<16x64xf32>
    %129 = tpu.matmul %127, %126, %cst_41 {dimension_numbers = #tpu.dot_dimension_numbers<[1], [0], [0], [1], [0, 0, 1, 1], [], []>} : vector<16x4xbf16>, vector<4x64xbf16>, vector<16x64xf32> -> vector<16x64xf32>
    %cst_42 = arith.constant dense<0xFF800000> : vector<64xf32>
    %130 = vector.multi_reduction <maximumf>, %129, %cst_42 [0] : vector<16x64xf32> to vector<64xf32>
    %131 = vector.shape_cast %130 : vector<64xf32> to vector<1x64xf32>
    %132 = vector.broadcast %131 : vector<1x64xf32> to vector<16x64xf32>
    %133 = arith.subf %129, %132 : vector<16x64xf32>
    %134 = math.exp %133 : vector<16x64xf32>
    %cst_43 = arith.constant dense<0.000000e+00> : vector<64xf32>
    %135 = vector.multi_reduction <add>, %134, %cst_43 [0] : vector<16x64xf32> to vector<64xf32>
    %136 = vector.shape_cast %135 : vector<64xf32> to vector<1x64xf32>
    %137 = tpu.reciprocal %136 {approx = true} : vector<1x64xf32> -> vector<1x64xf32>
    %138 = vector.broadcast %137 : vector<1x64xf32> to vector<16x64xf32>
    %139 = arith.mulf %134, %138 : vector<16x64xf32>
    %140 = arith.truncf %139 : vector<16x64xf32> to vector<16x64xbf16>
    %cst_44 = arith.constant dense<0.000000e+00> : vector<4x64xf32>
    %141 = tpu.matmul %128, %140, %cst_44 {dimension_numbers = #tpu.dot_dimension_numbers<[1], [0], [0], [1], [0, 0, 1, 1], [], []>} : vector<4x16xbf16>, vector<16x64xbf16>, vector<4x64xf32> -> vector<4x64xf32>
    %142 = tpu.concatenate %29, %45, %61, %77, %93, %109, %125, %141 in 0 : vector<4x64xf32>, vector<4x64xf32>, vector<4x64xf32>, vector<4x64xf32>, vector<4x64xf32>, vector<4x64xf32>, vector<4x64xf32>, vector<4x64xf32> -> vector<32x64xf32>
    %143 = arith.truncf %142 : vector<32x64xf32> to vector<32x64xbf16>
    %c0_45 = arith.constant 0 : index
    %c0_46 = arith.constant 0 : index
    %144 = vector.load %arg7[%c0_45, %c0_46] : memref<32x32xbf16, #tpu.memory_space<vmem>>, vector<32x32xbf16>
    %cst_47 = arith.constant dense<0.000000e+00> : vector<32x64xf32>
    %145 = tpu.matmul %144, %143, %cst_47 {dimension_numbers = #tpu.dot_dimension_numbers<[1], [0], [0], [1], [0, 0, 1, 1], [], []>} : vector<32x32xbf16>, vector<32x64xbf16>, vector<32x64xf32> -> vector<32x64xf32>
    %c0_48 = arith.constant 0 : index
    %c0_49 = arith.constant 0 : index
    %146 = vector.load %arg8[%c0_48, %c0_49] : memref<32x1xf32, #tpu.memory_space<vmem>>, vector<32x1xf32>
    %147 = vector.broadcast %146 : vector<32x1xf32> to vector<32x64xf32>
    %148 = arith.addf %145, %147 : vector<32x64xf32>
    %c0_50 = arith.constant 0 : index
    %c0_51 = arith.constant 0 : index
    %c0_52 = arith.constant 0 : index
    %149 = vector.load %arg9[%c0_50, %c0_51, %c0_52] : memref<1x32x64xf32, #tpu.memory_space<vmem>>, vector<1x32x64xf32>
    %150 = vector.shape_cast %149 : vector<1x32x64xf32> to vector<32x64xf32>
    %151 = vector.shape_cast %148 : vector<32x64xf32> to vector<1x32x64xf32>
    tpu.vector_store %arg9[%c0_50, %c0_51, %c0_52], %151 {strides = array<i32>} : memref<1x32x64xf32, #tpu.memory_space<vmem>>, vector<1x32x64xf32>,
    return
  }
  func.func @transform_0(%arg0: i32, %arg1: i32) -> (i32, i32, i32) {
    %c0_i32 = arith.constant 0 : i32
    %c0_i32_0 = arith.constant 0 : i32
    return %arg0, %c0_i32, %arg1 : i32, i32, i32
  }
  func.func @transform_1(%arg0: i32, %arg1: i32) -> (i32, i32, i32) {
    %c0_i32 = arith.constant 0 : i32
    %c0_i32_0 = arith.constant 0 : i32
    %c0_i32_1 = arith.constant 0 : i32
    return %arg0, %c0_i32, %c0_i32_0 : i32, i32, i32
  }
  func.func @transform_2(%arg0: i32, %arg1: i32) -> (i32, i32, i32) {
    %c0_i32 = arith.constant 0 : i32
    %c0_i32_0 = arith.constant 0 : i32
    %c0_i32_1 = arith.constant 0 : i32
    return %arg0, %c0_i32, %c0_i32_0 : i32, i32, i32
  }
  func.func @transform_3(%arg0: i32, %arg1: i32) -> (i32, i32) {
    %c0_i32 = arith.constant 0 : i32
    %c0_i32_0 = arith.constant 0 : i32
    %c0_i32_1 = arith.constant 0 : i32
    return %c0_i32, %c0_i32_0 : i32, i32
  }
  func.func @transform_4(%arg0: i32, %arg1: i32) -> (i32, i32) {
    %c0_i32 = arith.constant 0 : i32
    %c0_i32_0 = arith.constant 0 : i32
    %c0_i32_1 = arith.constant 0 : i32
    return %c0_i32, %c0_i32_0 : i32, i32
  }
  func.func @transform_5(%arg0: i32, %arg1: i32) -> (i32, i32) {
    %c0_i32 = arith.constant 0 : i32
    %c0_i32_0 = arith.constant 0 : i32
    %c0_i32_1 = arith.constant 0 : i32
    return %c0_i32, %c0_i32_0 : i32, i32
  }
  func.func @transform_6(%arg0: i32, %arg1: i32) -> (i32, i32) {
    %c0_i32 = arith.constant 0 : i32
    %c0_i32_0 = arith.constant 0 : i32
    %c0_i32_1 = arith.constant 0 : i32
    return %c0_i32, %c0_i32_0 : i32, i32
  }
  func.func @transform_7(%arg0: i32, %arg1: i32) -> (i32, i32, i32) {
    %c0_i32 = arith.constant 0 : i32
    %c0_i32_0 = arith.constant 0 : i32
    return %arg0, %c0_i32, %arg1 : i32, i32, i32
  }
}

</mosaic_0001>

<llo_original>
// kernel: efficient_mha.2
$region0: #{efficient_mha.2}
  #allocation0 [shape = 'u32[]', space=smem, size = 0x4, offset = 0x4, fixed_abs, tag = 'smem constant byte address 0x4 - core index']
  #allocation1 [shape = 'u32[144,128]{1,0:T(1,128)}', space=vmem, size = 0x12000, scoped, tag = 'internal scratch']
  %s0 = inlined_call_operand.vmem [shape: bf16[2,16,128], index: 0, kind: input, shape index: {}]
  %s1 = inlined_call_operand.vmem [shape: bf16[128,32], index: 1, kind: input, shape index: {}]
  %s2 = inlined_call_operand.vmem [shape: f32[1,32], index: 2, kind: input, shape index: {}]
  %s3 = inlined_call_operand.vmem [shape: f32[1,32], index: 3, kind: input, shape index: {}]
  %s4 = inlined_call_operand.vmem [shape: f32[1,32], index: 4, kind: input, shape index: {}]
  %s5 = inlined_call_operand.vmem [shape: bf16[32,32], index: 5, kind: input, shape index: {}]
  %s6 = inlined_call_operand.vmem [shape: f32[1,32], index: 6, kind: input, shape index: {}]
  %s7 = inlined_call_operand.vmem [shape: bf16[32,32], index: 7, kind: input, shape index: {}]
  %s8 = inlined_call_operand.vmem [shape: f32[32,1], index: 8, kind: input, shape index: {}]
  %s9 = inlined_call_operand.vmem [shape: bf16[2,16,32], index: 9, kind: output, shape index: {0}]
  %s10 = inlined_call_operand.vmem [shape: bf16[2,32,16], index: 10, kind: output, shape index: {1}]
  %11 = xla_tuple %s9, %s10
  %s12 = sld [smem:[#allocation0]]
  $region77: #{efficient_mha.2} parent=0
    _
  %s14 = ssub.s32 1, %s12
  %s15 = scalar_select 0, %s14, %s12
  loop: start=0, step=1, limit=4
  $region2: #{efficient_mha.2} parent=0 // loop_pre_header
    _
  $region3: #{efficient_mha.2} parent=0 // loop_header
    %s17 = sphi 0, %s21
    %p18 = scmp.ge.s32.totalorder %s17, 4
    %s27 = sphi 0, %s29
    %s30 = sphi 0, %s27
    %s31 = sphi 0, %s30
    %s47 = sphi 0, %s31
    %s51 = sphi 0, %s51
    %s53 = sphi 0, %s51
    %s54 = sphi 0, %s53
    %s68 = sphi 0, %s54
    %s72 = sphi 0, %s72
    %s74 = sphi 0, %s72
    %s75 = sphi 0, %s74
    %s89 = sphi 0, %s75
    %s93 = sphi 0, %s93
    %s95 = sphi 0, %s93
    %s96 = sphi 0, %s95
    %s110 = sphi 0, %s96
    %s114 = sphi 0, %s114
    %s116 = sphi 0, %s114
    %s117 = sphi 0, %s116
    %s131 = sphi 0, %s117
    %s135 = sphi 0, %s135
    %s137 = sphi 0, %s135
    %s138 = sphi 0, %s137
    %s152 = sphi 0, %s138
    %s156 = sphi 0, %s156
    %s158 = sphi 0, %s156
    %s159 = sphi 0, %s158
    %s173 = sphi 0, %s159
    %s177 = sphi 0, %s177
    %s179 = sphi 0, %s177
    %s180 = sphi 0, %s179
    %s194 = sphi 0, %s180
    %s198 = sphi 0, %s198
    %s200 = sphi 0, %s198
    %s201 = sphi 0, %s200
    %s215 = sphi 0, %s201
    %s221 = sphi 0, %s223
    %s224 = sphi 0, %s221
    %s225 = sphi 0, %s224
    %s241 = sphi 0, %s225
    %s247 = sphi 0, %s249
    %s250 = sphi 0, %s247
    %s251 = sphi 0, %s250
    %s267 = sphi 0, %s251
  $region4: #{efficient_mha.2} parent=0 // loop_header_branch
    %20 = sbr.rel (%p18) target = $region8
  $region5: #{efficient_mha.2} parent=0 // loop_body
    %s22 = ssub.s32 %s17, 1
    %s23 = ssub.s32 %s17, 2
    %s24 = sadd.s32 %s17, 1
    %s25 = ssub.s32 %s17, %s24
    %p26 = scmp.eq.s32.totalorder %s25, 0
    %s28 = sadd.s32 %s27, 1
    %s29 = scalar_select %p26, %s27, %s28
    %p32 = pneg %p26
    %p33 = scmp.eq.s32.totalorder %s17, 1
    %p34 = por %p32, %p33
    %p35 = scmp.ne.s32.totalorder %s27, %s30
    %p36 = scmp.eq.s32.totalorder %s17, 0
    %p37 = por %p35, %p36
    %p38 = scmp.ne.s32.totalorder %s27, %s30
    %p39 = scmp.eq.s32.totalorder %s22, 1
    %p40 = por %p38, %p39
    %p41 = scmp.ne.s32.totalorder %s30, %s31
    %p42 = scmp.eq.s32.totalorder %s22, 0
    %p43 = por %p41, %p42
    %p44 = scmp.ne.s32.totalorder %s30, %s31
    %p45 = scmp.eq.s32.totalorder %s23, 1
    %p46 = por %p44, %p45
    %p48 = scmp.ne.s32.totalorder %s31, %s47
    %p49 = scmp.eq.s32.totalorder %s23, 0
    %p50 = por %p48, %p49
    %s52 = sadd.s32 %s51, 1
    %p55 = scmp.eq.s32.totalorder %s17, 1
    %p56 = scmp.ne.s32.totalorder %s51, %s53
    %p57 = scmp.eq.s32.totalorder %s17, 0
    %p58 = por %p56, %p57
    %p59 = scmp.ne.s32.totalorder %s51, %s53
    %p60 = scmp.eq.s32.totalorder %s22, 1
    %p61 = por %p59, %p60
    %p62 = scmp.ne.s32.totalorder %s53, %s54
    %p63 = scmp.eq.s32.totalorder %s22, 0
    %p64 = por %p62, %p63
    %p65 = scmp.ne.s32.totalorder %s53, %s54
    %p66 = scmp.eq.s32.totalorder %s23, 1
    %p67 = por %p65, %p66
    %p69 = scmp.ne.s32.totalorder %s54, %s68
    %p70 = scmp.eq.s32.totalorder %s23, 0
    %p71 = por %p69, %p70
    %s73 = sadd.s32 %s72, 1
    %p76 = scmp.eq.s32.totalorder %s17, 1
    %p77 = scmp.ne.s32.totalorder %s72, %s74
    %p78 = scmp.eq.s32.totalorder %s17, 0
    %p79 = por %p77, %p78
    %p80 = scmp.ne.s32.totalorder %s72, %s74
    %p81 = scmp.eq.s32.totalorder %s22, 1
    %p82 = por %p80, %p81
    %p83 = scmp.ne.s32.totalorder %s74, %s75
    %p84 = scmp.eq.s32.totalorder %s22, 0
    %p85 = por %p83, %p84
    %p86 = scmp.ne.s32.totalorder %s74, %s75
    %p87 = scmp.eq.s32.totalorder %s23, 1
    %p88 = por %p86, %p87
    %p90 = scmp.ne.s32.totalorder %s75, %s89
    %p91 = scmp.eq.s32.totalorder %s23, 0
    %p92 = por %p90, %p91
    %s94 = sadd.s32 %s93, 1
    %p97 = scmp.eq.s32.totalorder %s17, 1
    %p98 = scmp.ne.s32.totalorder %s93, %s95
    %p99 = scmp.eq.s32.totalorder %s17, 0
    %p100 = por %p98, %p99
    %p101 = scmp.ne.s32.totalorder %s93, %s95
    %p102 = scmp.eq.s32.totalorder %s22, 1
    %p103 = por %p101, %p102
    %p104 = scmp.ne.s32.totalorder %s95, %s96
    %p105 = scmp.eq.s32.totalorder %s22, 0
    %p106 = por %p104, %p105
    %p107 = scmp.ne.s32.totalorder %s95, %s96
    %p108 = scmp.eq.s32.totalorder %s23, 1
    %p109 = por %p107, %p108
    %p111 = scmp.ne.s32.totalorder %s96, %s110
    %p112 = scmp.eq.s32.totalorder %s23, 0
    %p113 = por %p111, %p112
    %s115 = sadd.s32 %s114, 1
    %p118 = scmp.eq.s32.totalorder %s17, 1
    %p119 = scmp.ne.s32.totalorder %s114, %s116
    %p120 = scmp.eq.s32.totalorder %s17, 0
    %p121 = por %p119, %p120
    %p122 = scmp.ne.s32.totalorder %s114, %s116
    %p123 = scmp.eq.s32.totalorder %s22, 1
    %p124 = por %p122, %p123
    %p125 = scmp.ne.s32.totalorder %s116, %s117
    %p126 = scmp.eq.s32.totalorder %s22, 0
    %p127 = por %p125, %p126
    %p128 = scmp.ne.s32.totalorder %s116, %s117
    %p129 = scmp.eq.s32.totalorder %s23, 1
    %p130 = por %p128, %p129
    %p132 = scmp.ne.s32.totalorder %s117, %s131
    %p133 = scmp.eq.s32.totalorder %s23, 0
    %p134 = por %p132, %p133
    %s136 = sadd.s32 %s135, 1
    %p139 = scmp.eq.s32.totalorder %s17, 1
    %p140 = scmp.ne.s32.totalorder %s135, %s137
    %p141 = scmp.eq.s32.totalorder %s17, 0
    %p142 = por %p140, %p141
    %p143 = scmp.ne.s32.totalorder %s135, %s137
    %p144 = scmp.eq.s32.totalorder %s22, 1
    %p145 = por %p143, %p144
    %p146 = scmp.ne.s32.totalorder %s137, %s138
    %p147 = scmp.eq.s32.totalorder %s22, 0
    %p148 = por %p146, %p147
    %p149 = scmp.ne.s32.totalorder %s137, %s138
    %p150 = scmp.eq.s32.totalorder %s23, 1
    %p151 = por %p149, %p150
    %p153 = scmp.ne.s32.totalorder %s138, %s152
    %p154 = scmp.eq.s32.totalorder %s23, 0
    %p155 = por %p153, %p154
    %s157 = sadd.s32 %s156, 1
    %p160 = scmp.eq.s32.totalorder %s17, 1
    %p161 = scmp.ne.s32.totalorder %s156, %s158
    %p162 = scmp.eq.s32.totalorder %s17, 0
    %p163 = por %p161, %p162
    %p164 = scmp.ne.s32.totalorder %s156, %s158
    %p165 = scmp.eq.s32.totalorder %s22, 1
    %p166 = por %p164, %p165
    %p167 = scmp.ne.s32.totalorder %s158, %s159
    %p168 = scmp.eq.s32.totalorder %s22, 0
    %p169 = por %p167, %p168
    %p170 = scmp.ne.s32.totalorder %s158, %s159
    %p171 = scmp.eq.s32.totalorder %s23, 1
    %p172 = por %p170, %p171
    %p174 = scmp.ne.s32.totalorder %s159, %s173
    %p175 = scmp.eq.s32.totalorder %s23, 0
    %p176 = por %p174, %p175
    %s178 = sadd.s32 %s177, 1
    %p181 = scmp.eq.s32.totalorder %s17, 1
    %p182 = scmp.ne.s32.totalorder %s177, %s179
    %p183 = scmp.eq.s32.totalorder %s17, 0
    %p184 = por %p182, %p183
    %p185 = scmp.ne.s32.totalorder %s177, %s179
    %p186 = scmp.eq.s32.totalorder %s22, 1
    %p187 = por %p185, %p186
    %p188 = scmp.ne.s32.totalorder %s179, %s180
    %p189 = scmp.eq.s32.totalorder %s22, 0
    %p190 = por %p188, %p189
    %p191 = scmp.ne.s32.totalorder %s179, %s180
    %p192 = scmp.eq.s32.totalorder %s23, 1
    %p193 = por %p191, %p192
    %p195 = scmp.ne.s32.totalorder %s180, %s194
    %p196 = scmp.eq.s32.totalorder %s23, 0
    %p197 = por %p195, %p196
    %s199 = sadd.s32 %s198, 1
    %p202 = scmp.eq.s32.totalorder %s17, 1
    %p203 = scmp.ne.s32.totalorder %s198, %s200
    %p204 = scmp.eq.s32.totalorder %s17, 0
    %p205 = por %p203, %p204
    %p206 = scmp.ne.s32.totalorder %s198, %s200
    %p207 = scmp.eq.s32.totalorder %s22, 1
    %p208 = por %p206, %p207
    %p209 = scmp.ne.s32.totalorder %s200, %s201
    %p210 = scmp.eq.s32.totalorder %s22, 0
    %p211 = por %p209, %p210
    %p212 = scmp.ne.s32.totalorder %s200, %s201
    %p213 = scmp.eq.s32.totalorder %s23, 1
    %p214 = por %p212, %p213
    %p216 = scmp.ne.s32.totalorder %s201, %s215
    %p217 = scmp.eq.s32.totalorder %s23, 0
    %p218 = por %p216, %p217
    %s219 = ssub.s32 %s17, %s24
    %p220 = scmp.eq.s32.totalorder %s219, 0
    %s222 = sadd.s32 %s221, 1
    %s223 = scalar_select %p220, %s221, %s222
    %p226 = pneg %p220
    %p227 = scmp.eq.s32.totalorder %s17, 1
    %p228 = por %p226, %p227
    %p229 = scmp.ne.s32.totalorder %s221, %s224
    %p230 = scmp.eq.s32.totalorder %s17, 0
    %p231 = por %p229, %p230
    %p232 = scmp.ne.s32.totalorder %s221, %s224
    %p233 = scmp.eq.s32.totalorder %s22, 1
    %p234 = por %p232, %p233
    %p235 = scmp.ne.s32.totalorder %s224, %s225
    %p236 = scmp.eq.s32.totalorder %s22, 0
    %p237 = por %p235, %p236
    %p238 = scmp.ne.s32.totalorder %s224, %s225
    %p239 = scmp.eq.s32.totalorder %s23, 1
    %p240 = por %p238, %p239
    %p242 = scmp.ne.s32.totalorder %s225, %s241
    %p243 = scmp.eq.s32.totalorder %s23, 0
    %p244 = por %p242, %p243
    %s245 = ssub.s32 %s17, %s24
    %p246 = scmp.eq.s32.totalorder %s245, 0
    %s248 = sadd.s32 %s247, 1
    %s249 = scalar_select %p246, %s247, %s248
    %p252 = pneg %p246
    %p253 = scmp.eq.s32.totalorder %s17, 1
    %p254 = por %p252, %p253
    %p255 = scmp.ne.s32.totalorder %s247, %s250
    %p256 = scmp.eq.s32.totalorder %s17, 0
    %p257 = por %p255, %p256
    %p258 = scmp.ne.s32.totalorder %s247, %s250
    %p259 = scmp.eq.s32.totalorder %s22, 1
    %p260 = por %p258, %p259
    %p261 = scmp.ne.s32.totalorder %s250, %s251
    %p262 = scmp.eq.s32.totalorder %s22, 0
    %p263 = por %p261, %p262
    %p264 = scmp.ne.s32.totalorder %s250, %s251
    %p265 = scmp.eq.s32.totalorder %s23, 1
    %p266 = por %p264, %p265
    %p268 = scmp.ne.s32.totalorder %s251, %s267
    %p269 = scmp.eq.s32.totalorder %s23, 0
    %p270 = por %p268, %p269
    %p271 = scmp.le.s32.totalorder 1, %s17
    %p272 = scmp.lt.s32.totalorder %s17, 3
    %p273 = pnand %p271, %p272
    %p274 = pneg %p273
    // Predicated region
    $region9: #{efficient_mha.2} parent=5 // pred_check
      _
    $region10: #{efficient_mha.2} parent=5 // pred_check_branch
      %276 = sbr.rel (%p273) target = $region12
    $region11: #{efficient_mha.2} parent=5 // pred_region
      %s277 = ssub.s32 %s17, 1
      // Predicated region
      $region13: #{efficient_mha.2} parent=11 // pred_check
        %p278 = pneg %p64
      $region14: #{efficient_mha.2} parent=11 // pred_check_branch
        %280 = sbr.rel (%p278) target = $region16
      $region15: #{efficient_mha.2} parent=11 // pred_region
        _
      $region16: #{efficient_mha.2} parent=11 // pred_fallthru
        _
      // Predicated region
      $region17: #{efficient_mha.2} parent=11 // pred_check
        %p281 = pneg %p85
      $region18: #{efficient_mha.2} parent=11 // pred_check_branch
        %283 = sbr.rel (%p281) target = $region20
      $region19: #{efficient_mha.2} parent=11 // pred_region
        _
      $region20: #{efficient_mha.2} parent=11 // pred_fallthru
        _
      // Predicated region
      $region21: #{efficient_mha.2} parent=11 // pred_check
        %p284 = pneg %p106
      $region22: #{efficient_mha.2} parent=11 // pred_check_branch
        %286 = sbr.rel (%p284) target = $region24
      $region23: #{efficient_mha.2} parent=11 // pred_region
        _
      $region24: #{efficient_mha.2} parent=11 // pred_fallthru
        _
      // Predicated region
      $region25: #{efficient_mha.2} parent=11 // pred_check
        %p287 = pneg %p127
      $region26: #{efficient_mha.2} parent=11 // pred_check_branch
        %289 = sbr.rel (%p287) target = $region28
      $region27: #{efficient_mha.2} parent=11 // pred_region
        _
      $region28: #{efficient_mha.2} parent=11 // pred_fallthru
        _
      // Predicated region
      $region29: #{efficient_mha.2} parent=11 // pred_check
        %p290 = pneg %p148
      $region30: #{efficient_mha.2} parent=11 // pred_check_branch
        %292 = sbr.rel (%p290) target = $region32
      $region31: #{efficient_mha.2} parent=11 // pred_region
        _
      $region32: #{efficient_mha.2} parent=11 // pred_fallthru
        _
      // Predicated region
      $region33: #{efficient_mha.2} parent=11 // pred_check
        %p293 = pneg %p169
      $region34: #{efficient_mha.2} parent=11 // pred_check_branch
        %295 = sbr.rel (%p293) target = $region36
      $region35: #{efficient_mha.2} parent=11 // pred_region
        _
      $region36: #{efficient_mha.2} parent=11 // pred_fallthru
        _
      // Predicated region
      $region37: #{efficient_mha.2} parent=11 // pred_check
        %p296 = pneg %p190
      $region38: #{efficient_mha.2} parent=11 // pred_check_branch
        %298 = sbr.rel (%p296) target = $region40
      $region39: #{efficient_mha.2} parent=11 // pred_region
        _
      $region40: #{efficient_mha.2} parent=11 // pred_fallthru
        _
      // Predicated region
      $region41: #{efficient_mha.2} parent=11 // pred_check
        %p299 = pneg %p211
      $region42: #{efficient_mha.2} parent=11 // pred_check_branch
        %301 = sbr.rel (%p299) target = $region44
      $region43: #{efficient_mha.2} parent=11 // pred_region
        _
      $region44: #{efficient_mha.2} parent=11 // pred_fallthru
        _
    $region12: #{efficient_mha.2} parent=5 // pred_fallthru
      _
    %p302 = scmp.lt.s32.totalorder %s17, 2
    // Predicated region
    $region45: #{efficient_mha.2} parent=5 // pred_check
      %p303 = pneg %p302
    $region46: #{efficient_mha.2} parent=5 // pred_check_branch
      %305 = sbr.rel (%p303) target = $region48
    $region47: #{efficient_mha.2} parent=5 // pred_region
      // Predicated region
      $region49: #{efficient_mha.2} parent=47 // pred_check
        %p306 = pneg %p37
      $region50: #{efficient_mha.2} parent=47 // pred_check_branch
        %308 = sbr.rel (%p306) target = $region52
      $region51: #{efficient_mha.2} parent=47 // pred_region
        %p309 = scmp.lt.s32.totalorder %s17, 1
        %s310 = scalar_select %p309, %s17, 1
        %s311 = smul.addr %s310, 2
        %s312 = smul.addr %s311, 4
        %s313 = scalar_lea.vmem %s0, %s312
      $region52: #{efficient_mha.2} parent=47 // pred_fallthru
        _
    $region48: #{efficient_mha.2} parent=5 // pred_fallthru
      _
    %p314 = scmp.le.s32.totalorder 1, %s17
    %p315 = scmp.lt.s32.totalorder %s17, 3
    %p316 = pnand %p314, %p315
    %p317 = pneg %p316
    // Predicated region
    $region53: #{efficient_mha.2} parent=5 // pred_check
      _
    $region54: #{efficient_mha.2} parent=5 // pred_check_branch
      %319 = sbr.rel (%p316) target = $region56
    $region55: #{efficient_mha.2} parent=5 // pred_region
      %s320 = ssub.s32 %s17, 1
      %p321 = scmp.lt.s32.totalorder %s22, 1
      %s322 = scalar_select %p321, %s22, 1
      %s323 = smul.addr %s322, 2
      %s324 = smul.addr %s323, 4
      %s325 = scalar_lea.vmem %s0, %s324
      %p326 = pneg %p43
      %p327 = pneg %p40
      %p328 = pneg %p64
      %p329 = pneg %p61
      %p330 = pneg %p85
      %p331 = pneg %p82
      %p332 = pneg %p106
      %p333 = pneg %p103
      %p334 = pneg %p127
      %p335 = pneg %p124
      %p336 = pneg %p148
      %p337 = pneg %p145
      %p338 = pneg %p169
      %p339 = pneg %p166
      %p340 = pneg %p190
      %p341 = pneg %p187
      %p342 = pneg %p211
      %p343 = pneg %p208
      %p344 = pneg %p237
      %p345 = pneg %p234
      %p346 = scmp.lt.s32.totalorder %s22, 1
      %s347 = scalar_select %p346, %s22, 1
      %s348 = smul.addr %s347, 2
      %s349 = smul.addr %s348, 4
      %s350 = scalar_lea.vmem %s9, %s349
      %p351 = pneg %p263
      %p352 = pneg %p260
      %p353 = scmp.lt.s32.totalorder %s22, 1
      %s354 = scalar_select %p353, %s22, 1
      %s355 = smul.addr %s354, 4
      %s356 = smul.addr %s355, 4
      %s357 = scalar_lea.vmem %s10, %s356
      %p358 = scmp.lt.s32.totalorder %s22, 1
      %s359 = scalar_select %p358, %s22, 1
      %s360 = smul.addr %s359, 2
      %s361 = smul.addr %s360, 4
      %s362 = scalar_lea.vmem %s0, %s361
      %p363 = scmp.lt.s32.totalorder %s22, 1
      %s364 = scalar_select %p363, %s22, 1
      %s365 = smul.addr %s364, 2
      %s366 = smul.addr %s365, 4
      %s367 = scalar_lea.vmem %s9, %s366
      %p368 = scmp.lt.s32.totalorder %s22, 1
      %s369 = scalar_select %p368, %s22, 1
      %s370 = smul.addr %s369, 4
      %s371 = smul.addr %s370, 4
      %s372 = scalar_lea.vmem %s10, %s371
      %v374 = vld [vmem:[%s362] sm:$0xf]
      %v375 = vld [vmem:[%s362 + $0x4] sm:$0xf]
      %v376 = vld [vmem:[%s1] sm:$0xf]
      %v377 = vld [vmem:[%s1 + $0x4] sm:$0xf]
      %v378 = vld [vmem:[%s1 + $0x8] sm:$0xf]
      %v379 = vld [vmem:[%s1 + $0xc] sm:$0xf]
      %v380 = vld [vmem:[%s1 + $0x10] sm:$0xf]
      %v381 = vld [vmem:[%s1 + $0x14] sm:$0xf]
      %v382 = vld [vmem:[%s1 + $0x18] sm:$0xf]
      %v383 = vld [vmem:[%s1 + $0x1c] sm:$0xf]
      %v384 = vld [vmem:[%s1 + $0x20] sm:$0xf]
      %v385 = vld [vmem:[%s1 + $0x24] sm:$0xf]
      %v386 = vld [vmem:[%s1 + $0x28] sm:$0xf]
      %v387 = vld [vmem:[%s1 + $0x2c] sm:$0xf]
      %v388 = vld [vmem:[%s1 + $0x30] sm:$0xf]
      %v389 = vld [vmem:[%s1 + $0x34] sm:$0xf]
      %v390 = vld [vmem:[%s1 + $0x38] sm:$0xf]
      %v391 = vld [vmem:[%s1 + $0x3c] sm:$0xf]
      %v392 = vld [vmem:[%s2] sm:$0x1]
      %v394 = vlaneseq
      %v395 = vshrl.u32 %v394, 7
      %v396 = vsub.s32 0, %v395
      %v397 = vrot.slane %v392, %v396
      %v401 = vunpack.c.l.b16 %v374
      %v402 = vunpack.c.l.b16 %v375
      %v403 = vpack.c.b16 %v402, %v401
      %v421 = vunpack.c.l.b16 %v376
      %v422 = vunpack.c.l.b16 %v377
      %v423 = vunpack.c.l.b16 %v378
      %v424 = vunpack.c.l.b16 %v379
      %v425 = vunpack.c.l.b16 %v380
      %v426 = vunpack.c.l.b16 %v381
      %v427 = vunpack.c.l.b16 %v382
      %v428 = vunpack.c.l.b16 %v383
      %v429 = vunpack.c.l.b16 %v384
      %v430 = vunpack.c.l.b16 %v385
      %v431 = vunpack.c.l.b16 %v386
      %v432 = vunpack.c.l.b16 %v387
      %v433 = vunpack.c.l.b16 %v388
      %v434 = vunpack.c.l.b16 %v389
      %v435 = vunpack.c.l.b16 %v390
      %v436 = vunpack.c.l.b16 %v391
      %v437 = vpack.c.b16 %v422, %v421
      %v438 = vpack.c.b16 %v424, %v423
      %v439 = vpack.c.b16 %v426, %v425
      %v440 = vpack.c.b16 %v428, %v427
      %v441 = vpack.c.b16 %v430, %v429
      %v442 = vpack.c.b16 %v432, %v431
      %v443 = vpack.c.b16 %v434, %v433
      %v444 = vpack.c.b16 %v436, %v435
      %453 = vmatprep.subr.bf16.mxu0 0
      %454 = vmatpush1.bf16.msra.mxu0 %v444
      %455 = vmatprep.subr.bf16.mxu0 0
      %456 = vmatpush1.bf16.msra.mxu0 %v443
      %457 = vmatprep.subr.bf16.mxu0 0
      %458 = vmatpush1.bf16.msra.mxu0 %v442
      %459 = vmatprep.subr.bf16.mxu0 0
      %460 = vmatpush1.bf16.msra.mxu0 %v441
      %461 = vmatprep.subr.bf16.mxu0 0
      %462 = vmatpush1.bf16.msra.mxu0 %v440
      %463 = vmatprep.subr.bf16.mxu0 0
      %464 = vmatpush1.bf16.msra.mxu0 %v439
      %465 = vmatprep.subr.bf16.mxu0 0
      %466 = vmatpush1.bf16.msra.mxu0 %v438
      %467 = vmatprep.subr.bf16.mxu0 0
      %468 = vmatpush1.bf16.msra.mxu0 %v437
      %469 = vmatprep.subr.bf16.mxu0 0
      %470 = vmatpush2.bf16.msra.mxu0 0
      %471 = vmatprep.subr.bf16.mxu0 0
      %472 = vmatpush2.bf16.msra.mxu0 0
      %473 = vmatprep.subr.bf16.mxu0 0
      %474 = vmatpush2.bf16.msra.mxu0 0
      %475 = vmatprep.subr.bf16.mxu0 0
      %476 = vmatpush2.bf16.msra.mxu0 0
      %477 = vmatprep.subr.bf16.mxu0 0
      %478 = vmatpush2.bf16.msra.mxu0 0
      %479 = vmatprep.subr.bf16.mxu0 0
      %480 = vmatpush2.bf16.msra.mxu0 0
      %481 = vmatprep.subr.bf16.mxu0 0
      %482 = vmatpush2.bf16.msra.mxu0 0
      %483 = vmatprep.subr.bf16.mxu0 0
      %484 = vmatpush2.bf16.msra.mxu0 0
      %485 = vmatprep.mubr.bf16.mxu0 0
      %486 = vmatmul.mubr.bf16.gmra.mxu0 %v403
      %v487 = vpop.f32.mrf.mxu0
      %v488 = vadd.f32 %v397, %v487
      %v489 = vpop.f32.mrf.mxu0
      %v490 = vpop.f32.mrf.mxu0
      %v491 = vadd.f32 %v397, %v490
      %v492 = vpop.f32.mrf.mxu0
      %493 = vdwg.mxu0
      %vm494 = vcmask 261120
      %v495 = vsel %vm494, %v488, 0.0
      %496 = vadd.xlane.f32.xlu0 %v495
      %v497 = vpop.xlane.xlu0 %496
      %v498 = vsel %vm494, %v491, 0.0
      %499 = vadd.xlane.f32.xlu0 %v498
      %v500 = vpop.xlane.xlu0 %499
      %v501 = vrcp.pop 32.0
      %v502 = vmul.f32 %v497, %v501
      %v503 = vmul.f32 %v500, %v501
      %v504 = vsub.f32 %v488, %v502
      %v505 = vsub.f32 %v491, %v503
      %v506 = vmul.f32 %v504, %v504
      %v507 = vmul.f32 %v505, %v505
      %v508 = vsel %vm494, %v506, 0.0
      %509 = vadd.xlane.f32.xlu0 %v508
      %v510 = vpop.xlane.xlu0 %509
      %v511 = vsel %vm494, %v507, 0.0
      %512 = vadd.xlane.f32.xlu0 %v511
      %v513 = vpop.xlane.xlu0 %512
      %v514 = vmul.f32 %v510, %v501
      %v515 = vmul.f32 %v513, %v501
      %v516 = vadd.f32 %v514, 1e-05
      %v517 = vadd.f32 %v515, 1e-05
      %v518 = vrsqrt.pop %v516
      %v519 = vrsqrt.pop %v517
      %v520 = vmul.f32 %v504, %v518
      %v521 = vmul.f32 %v505, %v519
      %v522 = vld [vmem:[%s3] sm:$0x1]
      %v524 = vlaneseq
      %v525 = vshrl.u32 %v524, 7
      %v526 = vsub.s32 0, %v525
      %v527 = vrot.slane %v522, %v526
      %v529 = vmul.f32 %v520, %v527
      %v530 = vmul.f32 %v521, %v527
      %v531 = vld [vmem:[%s4] sm:$0x1]
      %v533 = vlaneseq
      %v534 = vshrl.u32 %v533, 7
      %v535 = vsub.s32 0, %v534
      %v536 = vrot.slane %v531, %v535
      %v538 = vadd.f32 %v529, %v536
      %v539 = vadd.f32 %v530, %v536
      %v540 = vpack.c.bf16 %v539, %v538
      %v541 = vld [vmem:[%s5] sm:$0xf]
      %v542 = vld [vmem:[%s5 + $0x4] sm:$0xf]
      %v543 = vld [vmem:[%s5 + $0x8] sm:$0xf]
      %v544 = vld [vmem:[%s5 + $0xc] sm:$0xf]
      %v545 = vld [vmem:[%s6] sm:$0x1]
      %v547 = vlaneseq
      %v548 = vshrl.u32 %v547, 7
      %v549 = vsub.s32 0, %v548
      %v550 = vrot.slane %v545, %v549
      %v556 = vunpack.c.l.b16 %v541
      %v557 = vunpack.c.l.b16 %v542
      %v558 = vunpack.c.l.b16 %v543
      %v559 = vunpack.c.l.b16 %v544
      %v560 = vpack.c.b16 %v557, %v556
      %v561 = vpack.c.b16 %v559, %v558
      %v565 = vsel %vm494, %v540, 0
      %567 = vmatprep.subr.bf16.mxu0 0
      %568 = vmatpush1.bf16.msra.mxu0 0
      %569 = vmatprep.subr.bf16.mxu0 0
      %570 = vmatpush1.bf16.msra.mxu0 0
      %571 = vmatprep.subr.bf16.mxu0 0
      %572 = vmatpush1.bf16.msra.mxu0 0
      %573 = vmatprep.subr.bf16.mxu0 0
      %574 = vmatpush1.bf16.msra.mxu0 0
      %575 = vmatprep.subr.bf16.mxu0 0
      %576 = vmatpush1.bf16.msra.mxu0 0
      %577 = vmatprep.subr.bf16.mxu0 0
      %578 = vmatpush1.bf16.msra.mxu0 0
      %579 = vmatprep.subr.bf16.mxu0 0
      %580 = vmatpush1.bf16.msra.mxu0 %v561
      %581 = vmatprep.subr.bf16.mxu0 0
      %582 = vmatpush1.bf16.msra.mxu0 %v560
      %583 = vmatprep.subr.bf16.mxu0 0
      %584 = vmatpush2.bf16.msra.mxu0 0
      %585 = vmatprep.subr.bf16.mxu0 0
      %586 = vmatpush2.bf16.msra.mxu0 0
      %587 = vmatprep.subr.bf16.mxu0 0
      %588 = vmatpush2.bf16.msra.mxu0 0
      %589 = vmatprep.subr.bf16.mxu0 0
      %590 = vmatpush2.bf16.msra.mxu0 0
      %591 = vmatprep.subr.bf16.mxu0 0
      %592 = vmatpush2.bf16.msra.mxu0 0
      %593 = vmatprep.subr.bf16.mxu0 0
      %594 = vmatpush2.bf16.msra.mxu0 0
      %595 = vmatprep.subr.bf16.mxu0 0
      %596 = vmatpush2.bf16.msra.mxu0 0
      %597 = vmatprep.subr.bf16.mxu0 0
      %598 = vmatpush2.bf16.msra.mxu0 0
      %599 = vmatprep.mubr.bf16.mxu0 0
      %600 = vmatmul.mubr.bf16.gmra.mxu0 %v565
      %v601 = vpop.f32.mrf.mxu0
      %v602 = vadd.f32 %v550, %v601
      %v603 = vpop.f32.mrf.mxu0
      %v604 = vpop.f32.mrf.mxu0
      %v605 = vadd.f32 %v550, %v604
      %v606 = vpop.f32.mrf.mxu0
      %607 = vdwg.mxu0
      %v608 = vpack.c.bf16 %v605, %v602
      %v610 = vunpack.c.l.b16 %v608
      %v611 = vunpack.c.h.b16 %v608
      %v612 = vpack.c.b16 %v610, %v610
      %v613 = vpack.c.b16 %v611, %v611
      %vm616 = vcmask 257024
      %617 = vst.msk [vmem:[%s367] sm:$0xf] %vm616, %v612
      %618 = vst.msk [vmem:[%s367 + $0x4] sm:$0xf] %vm616, %v613
      %v619 = vld [vmem:[%s7] sm:$0xf]
      %v620 = vld [vmem:[%s7 + $0x4] sm:$0xf]
      %v621 = vld [vmem:[%s7 + $0x8] sm:$0xf]
      %v622 = vld [vmem:[%s7 + $0xc] sm:$0xf]
      %v623 = vld [vmem:[%s8] sm:$0xff]
      %v624 = vld [vmem:[%s8 + $0x8] sm:$0xff]
      %v625 = vld [vmem:[%s8 + $0x10] sm:$0xff]
      %v626 = vld [vmem:[%s8 + $0x18] sm:$0xff]
      %628 = vset.pattern.permute.xlu0 0
      %629 = vperm.xlu0 %628, %v623
      %v630 = vpop.permute.xlu0 %629
      %633 = vset.pattern.permute.xlu0 0
      %634 = vperm.xlu0 %633, %v624
      %v635 = vpop.permute.xlu0 %634
      %638 = vset.pattern.permute.xlu0 0
      %639 = vperm.xlu0 %638, %v625
      %v640 = vpop.permute.xlu0 %639
      %643 = vset.pattern.permute.xlu0 0
      %644 = vperm.xlu0 %643, %v626
      %v645 = vpop.permute.xlu0 %644
      %v651 = vunpack.c.l.b16 %v619
      %v652 = vunpack.c.l.b16 %v620
      %v653 = vunpack.c.l.b16 %v621
      %v654 = vunpack.c.l.b16 %v622
      %v655 = vpack.c.b16 %v652, %v651
      %v656 = vpack.c.b16 %v654, %v653
      %v658 = vsel %vm494, %v655, 0
      %v661 = vsel %vm494, %v656, 0
      %663 = vmatprep.subr.bf16.mxu0 0
      %664 = vmatpush1.bf16.xpose.msra.mxu0 0
      %665 = vmatprep.subr.bf16.mxu0 0
      %666 = vmatpush1.bf16.xpose.msra.mxu0 0
      %667 = vmatprep.subr.bf16.mxu0 0
      %668 = vmatpush1.bf16.xpose.msra.mxu0 0
      %669 = vmatprep.subr.bf16.mxu0 0
      %670 = vmatpush1.bf16.xpose.msra.mxu0 0
      %671 = vmatprep.subr.bf16.mxu0 0
      %672 = vmatpush1.bf16.xpose.msra.mxu0 0
      %673 = vmatprep.subr.bf16.mxu0 0
      %674 = vmatpush1.bf16.xpose.msra.mxu0 0
      %675 = vmatprep.subr.bf16.mxu0 0
      %676 = vmatpush1.bf16.xpose.msra.mxu0 0
      %677 = vmatprep.subr.bf16.mxu0 0
      %678 = vmatpush1.bf16.xpose.msra.mxu0 %v565
      %679 = vmatprep.subr.bf16.mxu0 0
      %680 = vmatpush2.bf16.xpose.msra.mxu0 0
      %681 = vmatprep.subr.bf16.mxu0 0
      %682 = vmatpush2.bf16.xpose.msra.mxu0 0
      %683 = vmatprep.subr.bf16.mxu0 0
      %684 = vmatpush2.bf16.xpose.msra.mxu0 0
      %685 = vmatprep.subr.bf16.mxu0 0
      %686 = vmatpush2.bf16.xpose.msra.mxu0 0
      %687 = vmatprep.subr.bf16.mxu0 0
      %688 = vmatpush2.bf16.xpose.msra.mxu0 0
      %689 = vmatprep.subr.bf16.mxu0 0
      %690 = vmatpush2.bf16.xpose.msra.mxu0 0
      %691 = vmatprep.subr.bf16.mxu0 0
      %692 = vmatpush2.bf16.xpose.msra.mxu0 0
      %693 = vmatprep.subr.bf16.mxu0 0
      %694 = vmatpush2.bf16.xpose.msra.mxu0 0
      %695 = vmatprep.mubr.bf16.mxu0 0
      %696 = vmatmul.mubr.bf16.gmra.mxu0 %v658
      %v697 = vpop.f32.mrf.mxu0
      %v698 = vadd.f32 %v630, %v697
      %v699 = vpop.f32.mrf.mxu0
      %v700 = vpop.f32.mrf.mxu0
      %v701 = vadd.f32 %v635, %v700
      %v702 = vpop.f32.mrf.mxu0
      %703 = vmatprep.mubr.bf16.mxu0 0
      %704 = vmatmul.mubr.bf16.gmra.mxu0 %v661
      %v705 = vpop.f32.mrf.mxu0
      %v706 = vadd.f32 %v640, %v705
      %v707 = vpop.f32.mrf.mxu0
      %v708 = vpop.f32.mrf.mxu0
      %v709 = vadd.f32 %v645, %v708
      %v710 = vpop.f32.mrf.mxu0
      %711 = vdwg.mxu0
      %v712 = vpack.c.bf16 %v701, %v698
      %v713 = vpack.c.bf16 %v709, %v706
      %v716 = vunpack.c.l.b16 %v712
      %v717 = vunpack.c.h.b16 %v712
      %v718 = vunpack.c.l.b16 %v713
      %v719 = vunpack.c.h.b16 %v713
      %v720 = vpack.c.b16 %v716, %v716
      %v721 = vpack.c.b16 %v717, %v717
      %v722 = vpack.c.b16 %v718, %v718
      %v723 = vpack.c.b16 %v719, %v719
      %vm728 = vcmask 125952
      %729 = vst.msk [vmem:[%s372] sm:$0xf] %vm728, %v720
      %730 = vst.msk [vmem:[%s372 + $0x4] sm:$0xf] %vm728, %v721
      %731 = vst.msk [vmem:[%s372 + $0x8] sm:$0xf] %vm728, %v722
      %732 = vst.msk [vmem:[%s372 + $0xc] sm:$0xf] %vm728, %v723
      %p733 = scmp.lt.s32.totalorder %s22, 1
      %s734 = scalar_select %p733, %s22, 1
      %s735 = smul.addr %s734, 2
      %s736 = smul.addr %s735, 4
      %s737 = scalar_lea.vmem %s9, %s736
      %p738 = scmp.lt.s32.totalorder %s22, 1
      %s739 = scalar_select %p738, %s22, 1
      %s740 = smul.addr %s739, 4
      %s741 = smul.addr %s740, 4
      %s742 = scalar_lea.vmem %s10, %s741
      // Predicated region
      $region57: #{efficient_mha.2} parent=55 // pred_check
        %p743 = pneg %p234
      $region58: #{efficient_mha.2} parent=55 // pred_check_branch
        %745 = sbr.rel (%p743) target = $region60
      $region59: #{efficient_mha.2} parent=55 // pred_region
        _
      $region60: #{efficient_mha.2} parent=55 // pred_fallthru
        _
      // Predicated region
      $region61: #{efficient_mha.2} parent=55 // pred_check
        %p746 = pneg %p260
      $region62: #{efficient_mha.2} parent=55 // pred_check_branch
        %748 = sbr.rel (%p746) target = $region64
      $region63: #{efficient_mha.2} parent=55 // pred_region
        _
      $region64: #{efficient_mha.2} parent=55 // pred_fallthru
        _
    $region56: #{efficient_mha.2} parent=5 // pred_fallthru
      _
    %p749 = scmp.le.s32.totalorder 2, %s17
    // Predicated region
    $region65: #{efficient_mha.2} parent=5 // pred_check
      %p750 = pneg %p749
    $region66: #{efficient_mha.2} parent=5 // pred_check_branch
      %752 = sbr.rel (%p750) target = $region68
    $region67: #{efficient_mha.2} parent=5 // pred_region
      %s753 = ssub.s32 %s17, 2
      // Predicated region
      $region69: #{efficient_mha.2} parent=67 // pred_check
        %p754 = pneg %p240
      $region70: #{efficient_mha.2} parent=67 // pred_check_branch
        %756 = sbr.rel (%p754) target = $region72
      $region71: #{efficient_mha.2} parent=67 // pred_region
        %p757 = scmp.lt.s32.totalorder %s23, 1
        %s758 = scalar_select %p757, %s23, 1
        %s759 = smul.addr %s758, 2
        %s760 = smul.addr %s759, 4
        %s761 = scalar_lea.vmem %s9, %s760
      $region72: #{efficient_mha.2} parent=67 // pred_fallthru
        _
      // Predicated region
      $region73: #{efficient_mha.2} parent=67 // pred_check
        %p762 = pneg %p266
      $region74: #{efficient_mha.2} parent=67 // pred_check_branch
        %764 = sbr.rel (%p762) target = $region76
      $region75: #{efficient_mha.2} parent=67 // pred_region
        %p765 = scmp.lt.s32.totalorder %s23, 1
        %s766 = scalar_select %p765, %s23, 1
        %s767 = smul.addr %s766, 4
        %s768 = smul.addr %s767, 4
        %s769 = scalar_lea.vmem %s10, %s768
      $region76: #{efficient_mha.2} parent=67 // pred_fallthru
        _
    $region68: #{efficient_mha.2} parent=5 // pred_fallthru
      _
  $region6: #{efficient_mha.2} parent=0 // loop_footer
    %s21 = sadd.s32 1, %s17
  $region7: #{efficient_mha.2} parent=0 // loop_footer_branch
    %16 = sbr.rel target = $region3
  $region8: #{efficient_mha.2} parent=0 // loop_exit
    _

// kernel: efficient_mha.3
$region0: #{efficient_mha.3}
  #allocation0 [shape = 'u32[]', space=smem, size = 0x4, offset = 0x4, fixed_abs, tag = 'smem constant byte address 0x4 - core index']
  #allocation1 [shape = 'u32[144,128]{1,0:T(1,128)}', space=vmem, size = 0x12000, scoped, tag = 'internal scratch']
  %s0 = inlined_call_operand.vmem [shape: bf16[2,32,64], index: 0, kind: input, shape index: {}]
  %s1 = inlined_call_operand.vmem [shape: bf16[2,16,32], index: 1, kind: input, shape index: {}]
  %s2 = inlined_call_operand.vmem [shape: bf16[2,32,16], index: 2, kind: input, shape index: {}]
  %s3 = inlined_call_operand.vmem [shape: bf16[32,32], index: 3, kind: input, shape index: {}]
  %s4 = inlined_call_operand.vmem [shape: f32[32,1], index: 4, kind: input, shape index: {}]
  %s5 = inlined_call_operand.vmem [shape: bf16[32,32], index: 5, kind: input, shape index: {}]
  %s6 = inlined_call_operand.vmem [shape: f32[32,1], index: 6, kind: input, shape index: {}]
  %s7 = inlined_call_operand.vmem [shape: f32[2,32,64], index: 7, kind: output, shape index: {}]
  %s8 = sld [smem:[#allocation0]]
  $region61: #{efficient_mha.3} parent=0
    _
  %s10 = ssub.s32 1, %s8
  %s11 = scalar_select 0, %s10, %s8
  loop: start=0, step=1, limit=4
  $region2: #{efficient_mha.3} parent=0 // loop_pre_header
    _
  $region3: #{efficient_mha.3} parent=0 // loop_header
    %s13 = sphi 0, %s17
    %p14 = scmp.ge.s32.totalorder %s13, 4
    %s20 = sphi 0, %s32
    %s21 = sphi 0, %s28
    %s22 = sphi 0, %s20
    %s23 = sphi 0, %s21
    %s24 = sphi 0, %s22
    %s25 = sphi 0, %s23
    %s37 = sphi 0, %s39
    %s40 = sphi 0, %s37
    %s41 = sphi 0, %s40
    %s57 = sphi 0, %s41
    %s63 = sphi 0, %s65
    %s66 = sphi 0, %s63
    %s67 = sphi 0, %s66
    %s83 = sphi 0, %s67
    %s89 = sphi 0, %s91
    %s92 = sphi 0, %s89
    %s93 = sphi 0, %s92
    %s109 = sphi 0, %s93
    %s113 = sphi 0, %s113
    %s115 = sphi 0, %s113
    %s116 = sphi 0, %s115
    %s130 = sphi 0, %s116
    %s134 = sphi 0, %s134
    %s136 = sphi 0, %s134
    %s137 = sphi 0, %s136
    %s151 = sphi 0, %s137
    %s155 = sphi 0, %s155
    %s157 = sphi 0, %s155
    %s158 = sphi 0, %s157
    %s172 = sphi 0, %s158
    %s176 = sphi 0, %s176
    %s178 = sphi 0, %s176
    %s179 = sphi 0, %s178
    %s193 = sphi 0, %s179
    %s201 = sphi 0, %s203
    %s204 = sphi 0, %s201
    %s205 = sphi 0, %s204
    %s221 = sphi 0, %s205
  $region4: #{efficient_mha.3} parent=0 // loop_header_branch
    %16 = sbr.rel (%p14) target = $region8
  $region5: #{efficient_mha.3} parent=0 // loop_body
    %s18 = ssub.s32 %s13, 1
    %s19 = ssub.s32 %s13, 2
    %s26 = sadd.s32 1, %s21
    %p27 = scmp.ge.s32.totalorder %s26, 1
    %s28 = scalar_select %p27, 0, %s26
    %s29 = sadd.s32 1, %s20
    %s30 = scalar_select %p27, %s29, %s20
    %p31 = scmp.ge.s32.totalorder %s30, 2
    %s32 = scalar_select %p31, 0, %s30
    %s33 = ssub.s32 %s20, %s32
    %s34 = ssub.s32 %s21, %s28
    %s35 = sor.u32 %s33, %s34
    %p36 = scmp.eq.s32.totalorder %s35, 0
    %s38 = sadd.s32 %s37, 1
    %s39 = scalar_select %p36, %s37, %s38
    %p42 = pneg %p36
    %p43 = scmp.eq.s32.totalorder %s13, 1
    %p44 = por %p42, %p43
    %p45 = scmp.ne.s32.totalorder %s37, %s40
    %p46 = scmp.eq.s32.totalorder %s13, 0
    %p47 = por %p45, %p46
    %p48 = scmp.ne.s32.totalorder %s37, %s40
    %p49 = scmp.eq.s32.totalorder %s18, 1
    %p50 = por %p48, %p49
    %p51 = scmp.ne.s32.totalorder %s40, %s41
    %p52 = scmp.eq.s32.totalorder %s18, 0
    %p53 = por %p51, %p52
    %p54 = scmp.ne.s32.totalorder %s40, %s41
    %p55 = scmp.eq.s32.totalorder %s19, 1
    %p56 = por %p54, %p55
    %p58 = scmp.ne.s32.totalorder %s41, %s57
    %p59 = scmp.eq.s32.totalorder %s19, 0
    %p60 = por %p58, %p59
    %s61 = ssub.s32 %s20, %s32
    %p62 = scmp.eq.s32.totalorder %s61, 0
    %s64 = sadd.s32 %s63, 1
    %s65 = scalar_select %p62, %s63, %s64
    %p68 = pneg %p62
    %p69 = scmp.eq.s32.totalorder %s13, 1
    %p70 = por %p68, %p69
    %p71 = scmp.ne.s32.totalorder %s63, %s66
    %p72 = scmp.eq.s32.totalorder %s13, 0
    %p73 = por %p71, %p72
    %p74 = scmp.ne.s32.totalorder %s63, %s66
    %p75 = scmp.eq.s32.totalorder %s18, 1
    %p76 = por %p74, %p75
    %p77 = scmp.ne.s32.totalorder %s66, %s67
    %p78 = scmp.eq.s32.totalorder %s18, 0
    %p79 = por %p77, %p78
    %p80 = scmp.ne.s32.totalorder %s66, %s67
    %p81 = scmp.eq.s32.totalorder %s19, 1
    %p82 = por %p80, %p81
    %p84 = scmp.ne.s32.totalorder %s67, %s83
    %p85 = scmp.eq.s32.totalorder %s19, 0
    %p86 = por %p84, %p85
    %s87 = ssub.s32 %s20, %s32
    %p88 = scmp.eq.s32.totalorder %s87, 0
    %s90 = sadd.s32 %s89, 1
    %s91 = scalar_select %p88, %s89, %s90
    %p94 = pneg %p88
    %p95 = scmp.eq.s32.totalorder %s13, 1
    %p96 = por %p94, %p95
    %p97 = scmp.ne.s32.totalorder %s89, %s92
    %p98 = scmp.eq.s32.totalorder %s13, 0
    %p99 = por %p97, %p98
    %p100 = scmp.ne.s32.totalorder %s89, %s92
    %p101 = scmp.eq.s32.totalorder %s18, 1
    %p102 = por %p100, %p101
    %p103 = scmp.ne.s32.totalorder %s92, %s93
    %p104 = scmp.eq.s32.totalorder %s18, 0
    %p105 = por %p103, %p104
    %p106 = scmp.ne.s32.totalorder %s92, %s93
    %p107 = scmp.eq.s32.totalorder %s19, 1
    %p108 = por %p106, %p107
    %p110 = scmp.ne.s32.totalorder %s93, %s109
    %p111 = scmp.eq.s32.totalorder %s19, 0
    %p112 = por %p110, %p111
    %s114 = sadd.s32 %s113, 1
    %p117 = scmp.eq.s32.totalorder %s13, 1
    %p118 = scmp.ne.s32.totalorder %s113, %s115
    %p119 = scmp.eq.s32.totalorder %s13, 0
    %p120 = por %p118, %p119
    %p121 = scmp.ne.s32.totalorder %s113, %s115
    %p122 = scmp.eq.s32.totalorder %s18, 1
    %p123 = por %p121, %p122
    %p124 = scmp.ne.s32.totalorder %s115, %s116
    %p125 = scmp.eq.s32.totalorder %s18, 0
    %p126 = por %p124, %p125
    %p127 = scmp.ne.s32.totalorder %s115, %s116
    %p128 = scmp.eq.s32.totalorder %s19, 1
    %p129 = por %p127, %p128
    %p131 = scmp.ne.s32.totalorder %s116, %s130
    %p132 = scmp.eq.s32.totalorder %s19, 0
    %p133 = por %p131, %p132
    %s135 = sadd.s32 %s134, 1
    %p138 = scmp.eq.s32.totalorder %s13, 1
    %p139 = scmp.ne.s32.totalorder %s134, %s136
    %p140 = scmp.eq.s32.totalorder %s13, 0
    %p141 = por %p139, %p140
    %p142 = scmp.ne.s32.totalorder %s134, %s136
    %p143 = scmp.eq.s32.totalorder %s18, 1
    %p144 = por %p142, %p143
    %p145 = scmp.ne.s32.totalorder %s136, %s137
    %p146 = scmp.eq.s32.totalorder %s18, 0
    %p147 = por %p145, %p146
    %p148 = scmp.ne.s32.totalorder %s136, %s137
    %p149 = scmp.eq.s32.totalorder %s19, 1
    %p150 = por %p148, %p149
    %p152 = scmp.ne.s32.totalorder %s137, %s151
    %p153 = scmp.eq.s32.totalorder %s19, 0
    %p154 = por %p152, %p153
    %s156 = sadd.s32 %s155, 1
    %p159 = scmp.eq.s32.totalorder %s13, 1
    %p160 = scmp.ne.s32.totalorder %s155, %s157
    %p161 = scmp.eq.s32.totalorder %s13, 0
    %p162 = por %p160, %p161
    %p163 = scmp.ne.s32.totalorder %s155, %s157
    %p164 = scmp.eq.s32.totalorder %s18, 1
    %p165 = por %p163, %p164
    %p166 = scmp.ne.s32.totalorder %s157, %s158
    %p167 = scmp.eq.s32.totalorder %s18, 0
    %p168 = por %p166, %p167
    %p169 = scmp.ne.s32.totalorder %s157, %s158
    %p170 = scmp.eq.s32.totalorder %s19, 1
    %p171 = por %p169, %p170
    %p173 = scmp.ne.s32.totalorder %s158, %s172
    %p174 = scmp.eq.s32.totalorder %s19, 0
    %p175 = por %p173, %p174
    %s177 = sadd.s32 %s176, 1
    %p180 = scmp.eq.s32.totalorder %s13, 1
    %p181 = scmp.ne.s32.totalorder %s176, %s178
    %p182 = scmp.eq.s32.totalorder %s13, 0
    %p183 = por %p181, %p182
    %p184 = scmp.ne.s32.totalorder %s176, %s178
    %p185 = scmp.eq.s32.totalorder %s18, 1
    %p186 = por %p184, %p185
    %p187 = scmp.ne.s32.totalorder %s178, %s179
    %p188 = scmp.eq.s32.totalorder %s18, 0
    %p189 = por %p187, %p188
    %p190 = scmp.ne.s32.totalorder %s178, %s179
    %p191 = scmp.eq.s32.totalorder %s19, 1
    %p192 = por %p190, %p191
    %p194 = scmp.ne.s32.totalorder %s179, %s193
    %p195 = scmp.eq.s32.totalorder %s19, 0
    %p196 = por %p194, %p195
    %s197 = ssub.s32 %s20, %s32
    %s198 = ssub.s32 %s21, %s28
    %s199 = sor.u32 %s197, %s198
    %p200 = scmp.eq.s32.totalorder %s199, 0
    %s202 = sadd.s32 %s201, 1
    %s203 = scalar_select %p200, %s201, %s202
    %p206 = pneg %p200
    %p207 = scmp.eq.s32.totalorder %s13, 1
    %p208 = por %p206, %p207
    %p209 = scmp.ne.s32.totalorder %s201, %s204
    %p210 = scmp.eq.s32.totalorder %s13, 0
    %p211 = por %p209, %p210
    %p212 = scmp.ne.s32.totalorder %s201, %s204
    %p213 = scmp.eq.s32.totalorder %s18, 1
    %p214 = por %p212, %p213
    %p215 = scmp.ne.s32.totalorder %s204, %s205
    %p216 = scmp.eq.s32.totalorder %s18, 0
    %p217 = por %p215, %p216
    %p218 = scmp.ne.s32.totalorder %s204, %s205
    %p219 = scmp.eq.s32.totalorder %s19, 1
    %p220 = por %p218, %p219
    %p222 = scmp.ne.s32.totalorder %s205, %s221
    %p223 = scmp.eq.s32.totalorder %s19, 0
    %p224 = por %p222, %p223
    %p225 = scmp.le.s32.totalorder 1, %s13
    %p226 = scmp.lt.s32.totalorder %s13, 3
    %p227 = pnand %p225, %p226
    %p228 = pneg %p227
    // Predicated region
    $region9: #{efficient_mha.3} parent=5 // pred_check
      _
    $region10: #{efficient_mha.3} parent=5 // pred_check_branch
      %230 = sbr.rel (%p227) target = $region12
    $region11: #{efficient_mha.3} parent=5 // pred_region
      %s231 = ssub.s32 %s13, 1
      // Predicated region
      $region13: #{efficient_mha.3} parent=11 // pred_check
        %p232 = pneg %p126
      $region14: #{efficient_mha.3} parent=11 // pred_check_branch
        %234 = sbr.rel (%p232) target = $region16
      $region15: #{efficient_mha.3} parent=11 // pred_region
        _
      $region16: #{efficient_mha.3} parent=11 // pred_fallthru
        _
      // Predicated region
      $region17: #{efficient_mha.3} parent=11 // pred_check
        %p235 = pneg %p147
      $region18: #{efficient_mha.3} parent=11 // pred_check_branch
        %237 = sbr.rel (%p235) target = $region20
      $region19: #{efficient_mha.3} parent=11 // pred_region
        _
      $region20: #{efficient_mha.3} parent=11 // pred_fallthru
        _
      // Predicated region
      $region21: #{efficient_mha.3} parent=11 // pred_check
        %p238 = pneg %p168
      $region22: #{efficient_mha.3} parent=11 // pred_check_branch
        %240 = sbr.rel (%p238) target = $region24
      $region23: #{efficient_mha.3} parent=11 // pred_region
        _
      $region24: #{efficient_mha.3} parent=11 // pred_fallthru
        _
      // Predicated region
      $region25: #{efficient_mha.3} parent=11 // pred_check
        %p241 = pneg %p189
      $region26: #{efficient_mha.3} parent=11 // pred_check_branch
        %243 = sbr.rel (%p241) target = $region28
      $region27: #{efficient_mha.3} parent=11 // pred_region
        _
      $region28: #{efficient_mha.3} parent=11 // pred_fallthru
        _
    $region12: #{efficient_mha.3} parent=5 // pred_fallthru
      _
    %p244 = scmp.lt.s32.totalorder %s13, 2
    // Predicated region
    $region29: #{efficient_mha.3} parent=5 // pred_check
      %p245 = pneg %p244
    $region30: #{efficient_mha.3} parent=5 // pred_check_branch
      %247 = sbr.rel (%p245) target = $region32
    $region31: #{efficient_mha.3} parent=5 // pred_region
      // Predicated region
      $region33: #{efficient_mha.3} parent=31 // pred_check
        %p248 = pneg %p47
      $region34: #{efficient_mha.3} parent=31 // pred_check_branch
        %250 = sbr.rel (%p248) target = $region36
      $region35: #{efficient_mha.3} parent=31 // pred_region
        %p251 = scmp.lt.s32.totalorder %s20, 1
        %s252 = scalar_select %p251, %s20, 1
        %p253 = scmp.lt.s32.totalorder %s21, 0
        %s254 = scalar_select %p253, %s21, 0
        %s255 = smul.addr %s252, 4
        %s256 = sadd.s32 %s254, %s255
        %s257 = smul.addr %s256, 4
        %s258 = scalar_lea.vmem %s0, %s257
      $region36: #{efficient_mha.3} parent=31 // pred_fallthru
        _
      // Predicated region
      $region37: #{efficient_mha.3} parent=31 // pred_check
        %p259 = pneg %p73
      $region38: #{efficient_mha.3} parent=31 // pred_check_branch
        %261 = sbr.rel (%p259) target = $region40
      $region39: #{efficient_mha.3} parent=31 // pred_region
        %p262 = scmp.lt.s32.totalorder %s20, 1
        %s263 = scalar_select %p262, %s20, 1
        %s264 = smul.addr %s263, 2
        %s265 = smul.addr %s264, 4
        %s266 = scalar_lea.vmem %s1, %s265
      $region40: #{efficient_mha.3} parent=31 // pred_fallthru
        _
      // Predicated region
      $region41: #{efficient_mha.3} parent=31 // pred_check
        %p267 = pneg %p99
      $region42: #{efficient_mha.3} parent=31 // pred_check_branch
        %269 = sbr.rel (%p267) target = $region44
      $region43: #{efficient_mha.3} parent=31 // pred_region
        %p270 = scmp.lt.s32.totalorder %s20, 1
        %s271 = scalar_select %p270, %s20, 1
        %s272 = smul.addr %s271, 4
        %s273 = smul.addr %s272, 4
        %s274 = scalar_lea.vmem %s2, %s273
      $region44: #{efficient_mha.3} parent=31 // pred_fallthru
        _
    $region32: #{efficient_mha.3} parent=5 // pred_fallthru
      _
    %p275 = scmp.le.s32.totalorder 1, %s13
    %p276 = scmp.lt.s32.totalorder %s13, 3
    %p277 = pnand %p275, %p276
    %p278 = pneg %p277
    // Predicated region
    $region45: #{efficient_mha.3} parent=5 // pred_check
      _
    $region46: #{efficient_mha.3} parent=5 // pred_check_branch
      %280 = sbr.rel (%p277) target = $region48
    $region47: #{efficient_mha.3} parent=5 // pred_region
      %s281 = ssub.s32 %s13, 1
      %p282 = scmp.lt.s32.totalorder %s22, 1
      %s283 = scalar_select %p282, %s22, 1
      %p284 = scmp.lt.s32.totalorder %s23, 0
      %s285 = scalar_select %p284, %s23, 0
      %s286 = smul.addr %s283, 4
      %s287 = sadd.s32 %s285, %s286
      %s288 = smul.addr %s287, 4
      %s289 = scalar_lea.vmem %s0, %s288
      %p290 = pneg %p53
      %p291 = pneg %p50
      %p292 = scmp.lt.s32.totalorder %s22, 1
      %s293 = scalar_select %p292, %s22, 1
      %s294 = smul.addr %s293, 2
      %s295 = smul.addr %s294, 4
      %s296 = scalar_lea.vmem %s1, %s295
      %p297 = pneg %p79
      %p298 = pneg %p76
      %p299 = scmp.lt.s32.totalorder %s22, 1
      %s300 = scalar_select %p299, %s22, 1
      %s301 = smul.addr %s300, 4
      %s302 = smul.addr %s301, 4
      %s303 = scalar_lea.vmem %s2, %s302
      %p304 = pneg %p105
      %p305 = pneg %p102
      %p306 = pneg %p126
      %p307 = pneg %p123
      %p308 = pneg %p147
      %p309 = pneg %p144
      %p310 = pneg %p168
      %p311 = pneg %p165
      %p312 = pneg %p189
      %p313 = pneg %p186
      %p314 = pneg %p217
      %p315 = pneg %p214
      %p316 = scmp.lt.s32.totalorder %s22, 1
      %s317 = scalar_select %p316, %s22, 1
      %p318 = scmp.lt.s32.totalorder %s23, 0
      %s319 = scalar_select %p318, %s23, 0
      %s320 = smul.addr %s317, 4
      %s321 = sadd.s32 %s319, %s320
      %s322 = smul.addr %s321, 8
      %s323 = scalar_lea.vmem %s7, %s322
      %p324 = scmp.lt.s32.totalorder %s22, 1
      %s325 = scalar_select %p324, %s22, 1
      %p326 = scmp.lt.s32.totalorder %s23, 0
      %s327 = scalar_select %p326, %s23, 0
      %s328 = smul.addr %s325, 4
      %s329 = sadd.s32 %s327, %s328
      %s330 = smul.addr %s329, 4
      %s331 = scalar_lea.vmem %s0, %s330
      %p332 = scmp.lt.s32.totalorder %s22, 1
      %s333 = scalar_select %p332, %s22, 1
      %s334 = smul.addr %s333, 2
      %s335 = smul.addr %s334, 4
      %s336 = scalar_lea.vmem %s1, %s335
      %p337 = scmp.lt.s32.totalorder %s22, 1
      %s338 = scalar_select %p337, %s22, 1
      %s339 = smul.addr %s338, 4
      %s340 = smul.addr %s339, 4
      %s341 = scalar_lea.vmem %s2, %s340
      %p342 = scmp.lt.s32.totalorder %s22, 1
      %s343 = scalar_select %p342, %s22, 1
      %p344 = scmp.lt.s32.totalorder %s23, 0
      %s345 = scalar_select %p344, %s23, 0
      %s346 = smul.addr %s343, 4
      %s347 = sadd.s32 %s345, %s346
      %s348 = smul.addr %s347, 8
      %s349 = scalar_lea.vmem %s7, %s348
      %v351 = vld [vmem:[%s331] sm:$0xf]
      %v352 = vld [vmem:[%s331 + $0x4] sm:$0xf]
      %v353 = vld [vmem:[%s331 + $0x8] sm:$0xf]
      %v354 = vld [vmem:[%s331 + $0xc] sm:$0xf]
      %v355 = vld [vmem:[%s3] sm:$0xf]
      %v356 = vld [vmem:[%s3 + $0x4] sm:$0xf]
      %v357 = vld [vmem:[%s3 + $0x8] sm:$0xf]
      %v358 = vld [vmem:[%s3 + $0xc] sm:$0xf]
      %v359 = vld [vmem:[%s4] sm:$0xff]
      %v360 = vld [vmem:[%s4 + $0x8] sm:$0xff]
      %v361 = vld [vmem:[%s4 + $0x10] sm:$0xff]
      %v362 = vld [vmem:[%s4 + $0x18] sm:$0xff]
      %364 = vset.pattern.permute.xlu0 0
      %365 = vperm.xlu0 %364, %v359
      %v366 = vpop.permute.xlu0 %365
      %369 = vset.pattern.permute.xlu0 0
      %370 = vperm.xlu0 %369, %v360
      %v371 = vpop.permute.xlu0 %370
      %374 = vset.pattern.permute.xlu0 0
      %375 = vperm.xlu0 %374, %v361
      %v376 = vpop.permute.xlu0 %375
      %379 = vset.pattern.permute.xlu0 0
      %380 = vperm.xlu0 %379, %v362
      %v381 = vpop.permute.xlu0 %380
      %v387 = vunpack.c.l.b16 %v355
      %v388 = vunpack.c.l.b16 %v356
      %v389 = vunpack.c.l.b16 %v357
      %v390 = vunpack.c.l.b16 %v358
      %v391 = vpack.c.b16 %v388, %v387
      %v392 = vpack.c.b16 %v390, %v389
      %v397 = vunpack.c.l.b16 %v351
      %v398 = vunpack.c.l.b16 %v352
      %v399 = vunpack.c.l.b16 %v353
      %v400 = vunpack.c.l.b16 %v354
      %v401 = vpack.c.b16 %v398, %v397
      %v402 = vpack.c.b16 %v400, %v399
      %vm405 = vcmask 261120
      %v407 = vsel %vm405, %v391, 0
      %v410 = vsel %vm405, %v392, 0
      %412 = vmatprep.subr.bf16.mxu0 0
      %413 = vmatpush1.bf16.msra.mxu0 0
      %414 = vmatprep.subr.bf16.mxu0 0
      %415 = vmatpush1.bf16.msra.mxu0 0
      %416 = vmatprep.subr.bf16.mxu0 0
      %417 = vmatpush1.bf16.msra.mxu0 0
      %418 = vmatprep.subr.bf16.mxu0 0
      %419 = vmatpush1.bf16.msra.mxu0 0
      %420 = vmatprep.subr.bf16.mxu0 0
      %421 = vmatpush1.bf16.msra.mxu0 0
      %422 = vmatprep.subr.bf16.mxu0 0
      %423 = vmatpush1.bf16.msra.mxu0 0
      %424 = vmatprep.subr.bf16.mxu0 0
      %425 = vmatpush1.bf16.msra.mxu0 %v402
      %426 = vmatprep.subr.bf16.mxu0 0
      %427 = vmatpush1.bf16.msra.mxu0 %v401
      %428 = vmatprep.subr.bf16.mxu0 0
      %429 = vmatpush2.bf16.msra.mxu0 0
      %430 = vmatprep.subr.bf16.mxu0 0
      %431 = vmatpush2.bf16.msra.mxu0 0
      %432 = vmatprep.subr.bf16.mxu0 0
      %433 = vmatpush2.bf16.msra.mxu0 0
      %434 = vmatprep.subr.bf16.mxu0 0
      %435 = vmatpush2.bf16.msra.mxu0 0
      %436 = vmatprep.subr.bf16.mxu0 0
      %437 = vmatpush2.bf16.msra.mxu0 0
      %438 = vmatprep.subr.bf16.mxu0 0
      %439 = vmatpush2.bf16.msra.mxu0 0
      %440 = vmatprep.subr.bf16.mxu0 0
      %441 = vmatpush2.bf16.msra.mxu0 0
      %442 = vmatprep.subr.bf16.mxu0 0
      %443 = vmatpush2.bf16.msra.mxu0 0
      %444 = vmatprep.mubr.bf16.mxu0 0
      %445 = vmatmul.mubr.bf16.gmra.mxu0 %v407
      %v446 = vpop.f32.mrf.mxu0
      %v447 = vadd.f32 %v366, %v446
      %v448 = vpop.f32.mrf.mxu0
      %v449 = vpop.f32.mrf.mxu0
      %v450 = vadd.f32 %v371, %v449
      %v451 = vpop.f32.mrf.mxu0
      %452 = vmatprep.mubr.bf16.mxu0 0
      %453 = vmatmul.mubr.bf16.gmra.mxu0 %v410
      %v454 = vpop.f32.mrf.mxu0
      %v455 = vadd.f32 %v376, %v454
      %v456 = vpop.f32.mrf.mxu0
      %v457 = vpop.f32.mrf.mxu0
      %v458 = vadd.f32 %v381, %v457
      %v459 = vpop.f32.mrf.mxu0
      %460 = vdwg.mxu0
      %v461 = vmul.f32 %v447, 0.5
      %v462 = vmul.f32 %v450, 0.5
      %v463 = vmul.f32 %v455, 0.5
      %v464 = vmul.f32 %v458, 0.5
      %v465 = vpack.c.bf16 %v462, %v461
      %v466 = vpack.c.bf16 %v464, %v463
      %v467 = vld [vmem:[%s336] sm:$0xf]
      %v468 = vld [vmem:[%s336 + $0x4] sm:$0xf]
      %v469 = vld [vmem:[%s341] sm:$0xf]
      %v470 = vld [vmem:[%s341 + $0x4] sm:$0xf]
      %v471 = vld [vmem:[%s341 + $0x8] sm:$0xf]
      %v472 = vld [vmem:[%s341 + $0xc] sm:$0xf]
      %v475 = vunpack.c.l.b16 %v467
      %v476 = vunpack.c.l.b16 %v468
      %v477 = vpack.c.b16 %v476, %v475
      %vm478 = vcmask 31744
      %v480 = vsel %vm478, %v477, 0
      %vm482 = vcmask 1041408
      %v484 = vsel %vm482, %v465, 0
      %486 = vmatprep.subr.bf16.mxu0 0
      %487 = vmatpush1.bf16.msra.mxu0 0
      %488 = vmatprep.subr.bf16.mxu0 0
      %489 = vmatpush1.bf16.msra.mxu0 0
      %490 = vmatprep.subr.bf16.mxu0 0
      %491 = vmatpush1.bf16.msra.mxu0 0
      %492 = vmatprep.subr.bf16.mxu0 0
      %493 = vmatpush1.bf16.msra.mxu0 0
      %494 = vmatprep.subr.bf16.mxu0 0
      %495 = vmatpush1.bf16.msra.mxu0 0
      %496 = vmatprep.subr.bf16.mxu0 0
      %497 = vmatpush1.bf16.msra.mxu0 0
      %498 = vmatprep.subr.bf16.mxu0 0
      %499 = vmatpush1.bf16.msra.mxu0 0
      %500 = vmatprep.subr.bf16.mxu0 0
      %501 = vmatpush1.bf16.msra.mxu0 %v484
      %502 = vmatprep.subr.bf16.mxu0 0
      %503 = vmatpush2.bf16.msra.mxu0 0
      %504 = vmatprep.subr.bf16.mxu0 0
      %505 = vmatpush2.bf16.msra.mxu0 0
      %506 = vmatprep.subr.bf16.mxu0 0
      %507 = vmatpush2.bf16.msra.mxu0 0
      %508 = vmatprep.subr.bf16.mxu0 0
      %509 = vmatpush2.bf16.msra.mxu0 0
      %510 = vmatprep.subr.bf16.mxu0 0
      %511 = vmatpush2.bf16.msra.mxu0 0
      %512 = vmatprep.subr.bf16.mxu0 0
      %513 = vmatpush2.bf16.msra.mxu0 0
      %514 = vmatprep.subr.bf16.mxu0 0
      %515 = vmatpush2.bf16.msra.mxu0 0
      %516 = vmatprep.subr.bf16.mxu0 0
      %517 = vmatpush2.bf16.msra.mxu0 0
      %518 = vmatprep.mubr.bf16.mxu0 0
      %519 = vmatmul.mubr.bf16.gmra.mxu0 %v480
      %v520 = vpop.f32.mrf.mxu0
      %v521 = vadd.f32 0.0, %v520
      %v522 = vpop.f32.mrf.mxu0
      %v523 = vpop.f32.mrf.mxu0
      %v524 = vadd.f32 0.0, %v523
      %v525 = vpop.f32.mrf.mxu0
      %526 = vdwg.mxu0
      %vm527 = vcmask 523264
      %v528 = vsel %vm527, %v521, -inf
      %v529 = vsel %vm527, %v524, -inf
      %v530 = vmax.f32 %v528, %v529
      %v531 = vrot.slane %v530, 4
      %v532 = vmax.f32 %v530, %v531
      %v533 = vrot.slane %v532, 2
      %v534 = vmax.f32 %v532, %v533
      %v535 = vrot.slane %v534, 1
      %v536 = vmax.f32 %v534, %v535
      %v537 = vsub.f32 %v521, %v536
      %v538 = vsub.f32 %v524, %v536
      %v539 = vmul.f32 %v537, 1.442695
      %v540 = vpow.pop %v539
      %v541 = vmul.f32 %v538, 1.442695
      %v542 = vpow.pop %v541
      %v543 = vsel %vm527, %v540, 0.0
      %v544 = vsel %vm527, %v542, 0.0
      %v545 = vadd.f32 %v543, %v544
      %v546 = vrot.slane %v545, 4
      %v547 = vadd.f32 %v545, %v546
      %v548 = vrot.slane %v547, 2
      %v549 = vadd.f32 %v547, %v548
      %v550 = vrot.slane %v549, 1
      %v551 = vadd.f32 %v549, %v550
      %v552 = vrcp.pop %v551
      %v553 = vmul.f32 %v540, %v552
      %v554 = vmul.f32 %v542, %v552
      %v555 = vpack.c.bf16 %v554, %v553
      %vm556 = vcmask 130048
      %v558 = vsel %vm556, %v469, 0
      %560 = vmatprep.subr.bf16.mxu0 0
      %561 = vmatpush1.bf16.msra.mxu0 0
      %562 = vmatprep.subr.bf16.mxu0 0
      %563 = vmatpush1.bf16.msra.mxu0 0
      %564 = vmatprep.subr.bf16.mxu0 0
      %565 = vmatpush1.bf16.msra.mxu0 0
      %566 = vmatprep.subr.bf16.mxu0 0
      %567 = vmatpush1.bf16.msra.mxu0 0
      %568 = vmatprep.subr.bf16.mxu0 0
      %569 = vmatpush1.bf16.msra.mxu0 0
      %570 = vmatprep.subr.bf16.mxu0 0
      %571 = vmatpush1.bf16.msra.mxu0 0
      %572 = vmatprep.subr.bf16.mxu0 0
      %573 = vmatpush1.bf16.msra.mxu0 0
      %574 = vmatprep.subr.bf16.mxu0 0
      %575 = vmatpush1.bf16.msra.mxu0 %v555
      %576 = vmatprep.subr.bf16.mxu0 0
      %577 = vmatpush2.bf16.msra.mxu0 0
      %578 = vmatprep.subr.bf16.mxu0 0
      %579 = vmatpush2.bf16.msra.mxu0 0
      %580 = vmatprep.subr.bf16.mxu0 0
      %581 = vmatpush2.bf16.msra.mxu0 0
      %582 = vmatprep.subr.bf16.mxu0 0
      %583 = vmatpush2.bf16.msra.mxu0 0
      %584 = vmatprep.subr.bf16.mxu0 0
      %585 = vmatpush2.bf16.msra.mxu0 0
      %586 = vmatprep.subr.bf16.mxu0 0
      %587 = vmatpush2.bf16.msra.mxu0 0
      %588 = vmatprep.subr.bf16.mxu0 0
      %589 = vmatpush2.bf16.msra.mxu0 0
      %590 = vmatprep.subr.bf16.mxu0 0
      %591 = vmatpush2.bf16.msra.mxu0 0
      %592 = vmatprep.mubr.bf16.mxu0 0
      %593 = vmatmul.mubr.bf16.gmra.mxu0 %v558
      %v594 = vpop.f32.mrf.mxu0
      %v595 = vadd.f32 0.0, %v594
      %v596 = vpop.f32.mrf.mxu0
      %v597 = vpop.f32.mrf.mxu0
      %v598 = vpop.f32.mrf.mxu0
      %599 = vdwg.mxu0
      %600 = vrot.lane.b32.xlu0 %v477, 124
      %v601 = vpop.permute.xlu0 %600
      %v603 = vrot.slane %v465, 2
      %v605 = vsel %vm478, %v601, 0
      %v608 = vsel %vm482, %v603, 0
      %610 = vmatprep.subr.bf16.mxu0 0
      %611 = vmatpush1.bf16.msra.mxu0 0
      %612 = vmatprep.subr.bf16.mxu0 0
      %613 = vmatpush1.bf16.msra.mxu0 0
      %614 = vmatprep.subr.bf16.mxu0 0
      %615 = vmatpush1.bf16.msra.mxu0 0
      %616 = vmatprep.subr.bf16.mxu0 0
      %617 = vmatpush1.bf16.msra.mxu0 0
      %618 = vmatprep.subr.bf16.mxu0 0
      %619 = vmatpush1.bf16.msra.mxu0 0
      %620 = vmatprep.subr.bf16.mxu0 0
      %621 = vmatpush1.bf16.msra.mxu0 0
      %622 = vmatprep.subr.bf16.mxu0 0
      %623 = vmatpush1.bf16.msra.mxu0 0
      %624 = vmatprep.subr.bf16.mxu0 0
      %625 = vmatpush1.bf16.msra.mxu0 %v608
      %626 = vmatprep.subr.bf16.mxu0 0
      %627 = vmatpush2.bf16.msra.mxu0 0
      %628 = vmatprep.subr.bf16.mxu0 0
      %629 = vmatpush2.bf16.msra.mxu0 0
      %630 = vmatprep.subr.bf16.mxu0 0
      %631 = vmatpush2.bf16.msra.mxu0 0
      %632 = vmatprep.subr.bf16.mxu0 0
      %633 = vmatpush2.bf16.msra.mxu0 0
      %634 = vmatprep.subr.bf16.mxu0 0
      %635 = vmatpush2.bf16.msra.mxu0 0
      %636 = vmatprep.subr.bf16.mxu0 0
      %637 = vmatpush2.bf16.msra.mxu0 0
      %638 = vmatprep.subr.bf16.mxu0 0
      %639 = vmatpush2.bf16.msra.mxu0 0
      %640 = vmatprep.subr.bf16.mxu0 0
      %641 = vmatpush2.bf16.msra.mxu0 0
      %642 = vmatprep.mubr.bf16.mxu0 0
      %643 = vmatmul.mubr.bf16.gmra.mxu0 %v605
      %v644 = vpop.f32.mrf.mxu0
      %v645 = vadd.f32 0.0, %v644
      %v646 = vpop.f32.mrf.mxu0
      %v647 = vpop.f32.mrf.mxu0
      %v648 = vadd.f32 0.0, %v647
      %v649 = vpop.f32.mrf.mxu0
      %650 = vdwg.mxu0
      %v651 = vsel %vm527, %v645, -inf
      %v652 = vsel %vm527, %v648, -inf
      %v653 = vmax.f32 %v651, %v652
      %v654 = vrot.slane %v653, 4
      %v655 = vmax.f32 %v653, %v654
      %v656 = vrot.slane %v655, 2
      %v657 = vmax.f32 %v655, %v656
      %v658 = vrot.slane %v657, 1
      %v659 = vmax.f32 %v657, %v658
      %v660 = vsub.f32 %v645, %v659
      %v661 = vsub.f32 %v648, %v659
      %v662 = vmul.f32 %v660, 1.442695
      %v663 = vpow.pop %v662
      %v664 = vmul.f32 %v661, 1.442695
      %v665 = vpow.pop %v664
      %v666 = vsel %vm527, %v663, 0.0
      %v667 = vsel %vm527, %v665, 0.0
      %v668 = vadd.f32 %v666, %v667
      %v669 = vrot.slane %v668, 4
      %v670 = vadd.f32 %v668, %v669
      %v671 = vrot.slane %v670, 2
      %v672 = vadd.f32 %v670, %v671
      %v673 = vrot.slane %v672, 1
      %v674 = vadd.f32 %v672, %v673
      %v675 = vrcp.pop %v674
      %v676 = vmul.f32 %v663, %v675
      %v677 = vmul.f32 %v665, %v675
      %v678 = vpack.c.bf16 %v677, %v676
      %v680 = vunpack.c.l.b16 %v469
      %v681 = vpack.c.b16 %v680, %v680
      %v682 = vrot.slane %v681, 2
      %v684 = vsel %vm556, %v682, 0
      %686 = vmatprep.subr.bf16.mxu0 0
      %687 = vmatpush1.bf16.msra.mxu0 0
      %688 = vmatprep.subr.bf16.mxu0 0
      %689 = vmatpush1.bf16.msra.mxu0 0
      %690 = vmatprep.subr.bf16.mxu0 0
      %691 = vmatpush1.bf16.msra.mxu0 0
      %692 = vmatprep.subr.bf16.mxu0 0
      %693 = vmatpush1.bf16.msra.mxu0 0
      %694 = vmatprep.subr.bf16.mxu0 0
      %695 = vmatpush1.bf16.msra.mxu0 0
      %696 = vmatprep.subr.bf16.mxu0 0
      %697 = vmatpush1.bf16.msra.mxu0 0
      %698 = vmatprep.subr.bf16.mxu0 0
      %699 = vmatpush1.bf16.msra.mxu0 0
      %700 = vmatprep.subr.bf16.mxu0 0
      %701 = vmatpush1.bf16.msra.mxu0 %v678
      %702 = vmatprep.subr.bf16.mxu0 0
      %703 = vmatpush2.bf16.msra.mxu0 0
      %704 = vmatprep.subr.bf16.mxu0 0
      %705 = vmatpush2.bf16.msra.mxu0 0
      %706 = vmatprep.subr.bf16.mxu0 0
      %707 = vmatpush2.bf16.msra.mxu0 0
      %708 = vmatprep.subr.bf16.mxu0 0
      %709 = vmatpush2.bf16.msra.mxu0 0
      %710 = vmatprep.subr.bf16.mxu0 0
      %711 = vmatpush2.bf16.msra.mxu0 0
      %712 = vmatprep.subr.bf16.mxu0 0
      %713 = vmatpush2.bf16.msra.mxu0 0
      %714 = vmatprep.subr.bf16.mxu0 0
      %715 = vmatpush2.bf16.msra.mxu0 0
      %716 = vmatprep.subr.bf16.mxu0 0
      %717 = vmatpush2.bf16.msra.mxu0 0
      %718 = vmatprep.mubr.bf16.mxu0 0
      %719 = vmatmul.mubr.bf16.gmra.mxu0 %v684
      %v720 = vpop.f32.mrf.mxu0
      %v721 = vadd.f32 0.0, %v720
      %v722 = vpop.f32.mrf.mxu0
      %v723 = vpop.f32.mrf.mxu0
      %v724 = vpop.f32.mrf.mxu0
      %725 = vdwg.mxu0
      %726 = vrot.lane.b32.xlu0 %v477, 120
      %v727 = vpop.permute.xlu0 %726
      %v728 = vrot.slane %v465, 4
      %v730 = vsel %vm478, %v727, 0
      %v733 = vsel %vm482, %v728, 0
      %735 = vmatprep.subr.bf16.mxu0 0
      %736 = vmatpush1.bf16.msra.mxu0 0
      %737 = vmatprep.subr.bf16.mxu0 0
      %738 = vmatpush1.bf16.msra.mxu0 0
      %739 = vmatprep.subr.bf16.mxu0 0
      %740 = vmatpush1.bf16.msra.mxu0 0
      %741 = vmatprep.subr.bf16.mxu0 0
      %742 = vmatpush1.bf16.msra.mxu0 0
      %743 = vmatprep.subr.bf16.mxu0 0
      %744 = vmatpush1.bf16.msra.mxu0 0
      %745 = vmatprep.subr.bf16.mxu0 0
      %746 = vmatpush1.bf16.msra.mxu0 0
      %747 = vmatprep.subr.bf16.mxu0 0
      %748 = vmatpush1.bf16.msra.mxu0 0
      %749 = vmatprep.subr.bf16.mxu0 0
      %750 = vmatpush1.bf16.msra.mxu0 %v733
      %751 = vmatprep.subr.bf16.mxu0 0
      %752 = vmatpush2.bf16.msra.mxu0 0
      %753 = vmatprep.subr.bf16.mxu0 0
      %754 = vmatpush2.bf16.msra.mxu0 0
      %755 = vmatprep.subr.bf16.mxu0 0
      %756 = vmatpush2.bf16.msra.mxu0 0
      %757 = vmatprep.subr.bf16.mxu0 0
      %758 = vmatpush2.bf16.msra.mxu0 0
      %759 = vmatprep.subr.bf16.mxu0 0
      %760 = vmatpush2.bf16.msra.mxu0 0
      %761 = vmatprep.subr.bf16.mxu0 0
      %762 = vmatpush2.bf16.msra.mxu0 0
      %763 = vmatprep.subr.bf16.mxu0 0
      %764 = vmatpush2.bf16.msra.mxu0 0
      %765 = vmatprep.subr.bf16.mxu0 0
      %766 = vmatpush2.bf16.msra.mxu0 0
      %767 = vmatprep.mubr.bf16.mxu0 0
      %768 = vmatmul.mubr.bf16.gmra.mxu0 %v730
      %v769 = vpop.f32.mrf.mxu0
      %v770 = vadd.f32 0.0, %v769
      %v771 = vpop.f32.mrf.mxu0
      %v772 = vpop.f32.mrf.mxu0
      %v773 = vadd.f32 0.0, %v772
      %v774 = vpop.f32.mrf.mxu0
      %775 = vdwg.mxu0
      %v776 = vsel %vm527, %v770, -inf
      %v777 = vsel %vm527, %v773, -inf
      %v778 = vmax.f32 %v776, %v777
      %v779 = vrot.slane %v778, 4
      %v780 = vmax.f32 %v778, %v779
      %v781 = vrot.slane %v780, 2
      %v782 = vmax.f32 %v780, %v781
      %v783 = vrot.slane %v782, 1
      %v784 = vmax.f32 %v782, %v783
      %v785 = vsub.f32 %v770, %v784
      %v786 = vsub.f32 %v773, %v784
      %v787 = vmul.f32 %v785, 1.442695
      %v788 = vpow.pop %v787
      %v789 = vmul.f32 %v786, 1.442695
      %v790 = vpow.pop %v789
      %v791 = vsel %vm527, %v788, 0.0
      %v792 = vsel %vm527, %v790, 0.0
      %v793 = vadd.f32 %v791, %v792
      %v794 = vrot.slane %v793, 4
      %v795 = vadd.f32 %v793, %v794
      %v796 = vrot.slane %v795, 2
      %v797 = vadd.f32 %v795, %v796
      %v798 = vrot.slane %v797, 1
      %v799 = vadd.f32 %v797, %v798
      %v800 = vrcp.pop %v799
      %v801 = vmul.f32 %v788, %v800
      %v802 = vmul.f32 %v790, %v800
      %v803 = vpack.c.bf16 %v802, %v801
      %v805 = vsel %vm556, %v470, 0
      %807 = vmatprep.subr.bf16.mxu0 0
      %808 = vmatpush1.bf16.msra.mxu0 0
      %809 = vmatprep.subr.bf16.mxu0 0
      %810 = vmatpush1.bf16.msra.mxu0 0
      %811 = vmatprep.subr.bf16.mxu0 0
      %812 = vmatpush1.bf16.msra.mxu0 0
      %813 = vmatprep.subr.bf16.mxu0 0
      %814 = vmatpush1.bf16.msra.mxu0 0
      %815 = vmatprep.subr.bf16.mxu0 0
      %816 = vmatpush1.bf16.msra.mxu0 0
      %817 = vmatprep.subr.bf16.mxu0 0
      %818 = vmatpush1.bf16.msra.mxu0 0
      %819 = vmatprep.subr.bf16.mxu0 0
      %820 = vmatpush1.bf16.msra.mxu0 0
      %821 = vmatprep.subr.bf16.mxu0 0
      %822 = vmatpush1.bf16.msra.mxu0 %v803
      %823 = vmatprep.subr.bf16.mxu0 0
      %824 = vmatpush2.bf16.msra.mxu0 0
      %825 = vmatprep.subr.bf16.mxu0 0
      %826 = vmatpush2.bf16.msra.mxu0 0
      %827 = vmatprep.subr.bf16.mxu0 0
      %828 = vmatpush2.bf16.msra.mxu0 0
      %829 = vmatprep.subr.bf16.mxu0 0
      %830 = vmatpush2.bf16.msra.mxu0 0
      %831 = vmatprep.subr.bf16.mxu0 0
      %832 = vmatpush2.bf16.msra.mxu0 0
      %833 = vmatprep.subr.bf16.mxu0 0
      %834 = vmatpush2.bf16.msra.mxu0 0
      %835 = vmatprep.subr.bf16.mxu0 0
      %836 = vmatpush2.bf16.msra.mxu0 0
      %837 = vmatprep.subr.bf16.mxu0 0
      %838 = vmatpush2.bf16.msra.mxu0 0
      %839 = vmatprep.mubr.bf16.mxu0 0
      %840 = vmatmul.mubr.bf16.gmra.mxu0 %v805
      %v841 = vpop.f32.mrf.mxu0
      %v842 = vadd.f32 0.0, %v841
      %v843 = vpop.f32.mrf.mxu0
      %v844 = vpop.f32.mrf.mxu0
      %v845 = vpop.f32.mrf.mxu0
      %846 = vdwg.mxu0
      %847 = vrot.lane.b32.xlu0 %v477, 116
      %v848 = vpop.permute.xlu0 %847
      %v849 = vrot.slane %v465, 6
      %v851 = vsel %vm478, %v848, 0
      %v854 = vsel %vm482, %v849, 0
      %856 = vmatprep.subr.bf16.mxu0 0
      %857 = vmatpush1.bf16.msra.mxu0 0
      %858 = vmatprep.subr.bf16.mxu0 0
      %859 = vmatpush1.bf16.msra.mxu0 0
      %860 = vmatprep.subr.bf16.mxu0 0
      %861 = vmatpush1.bf16.msra.mxu0 0
      %862 = vmatprep.subr.bf16.mxu0 0
      %863 = vmatpush1.bf16.msra.mxu0 0
      %864 = vmatprep.subr.bf16.mxu0 0
      %865 = vmatpush1.bf16.msra.mxu0 0
      %866 = vmatprep.subr.bf16.mxu0 0
      %867 = vmatpush1.bf16.msra.mxu0 0
      %868 = vmatprep.subr.bf16.mxu0 0
      %869 = vmatpush1.bf16.msra.mxu0 0
      %870 = vmatprep.subr.bf16.mxu0 0
      %871 = vmatpush1.bf16.msra.mxu0 %v854
      %872 = vmatprep.subr.bf16.mxu0 0
      %873 = vmatpush2.bf16.msra.mxu0 0
      %874 = vmatprep.subr.bf16.mxu0 0
      %875 = vmatpush2.bf16.msra.mxu0 0
      %876 = vmatprep.subr.bf16.mxu0 0
      %877 = vmatpush2.bf16.msra.mxu0 0
      %878 = vmatprep.subr.bf16.mxu0 0
      %879 = vmatpush2.bf16.msra.mxu0 0
      %880 = vmatprep.subr.bf16.mxu0 0
      %881 = vmatpush2.bf16.msra.mxu0 0
      %882 = vmatprep.subr.bf16.mxu0 0
      %883 = vmatpush2.bf16.msra.mxu0 0
      %884 = vmatprep.subr.bf16.mxu0 0
      %885 = vmatpush2.bf16.msra.mxu0 0
      %886 = vmatprep.subr.bf16.mxu0 0
      %887 = vmatpush2.bf16.msra.mxu0 0
      %888 = vmatprep.mubr.bf16.mxu0 0
      %889 = vmatmul.mubr.bf16.gmra.mxu0 %v851
      %v890 = vpop.f32.mrf.mxu0
      %v891 = vadd.f32 0.0, %v890
      %v892 = vpop.f32.mrf.mxu0
      %v893 = vpop.f32.mrf.mxu0
      %v894 = vadd.f32 0.0, %v893
      %v895 = vpop.f32.mrf.mxu0
      %896 = vdwg.mxu0
      %v897 = vsel %vm527, %v891, -inf
      %v898 = vsel %vm527, %v894, -inf
      %v899 = vmax.f32 %v897, %v898
      %v900 = vrot.slane %v899, 4
      %v901 = vmax.f32 %v899, %v900
      %v902 = vrot.slane %v901, 2
      %v903 = vmax.f32 %v901, %v902
      %v904 = vrot.slane %v903, 1
      %v905 = vmax.f32 %v903, %v904
      %v906 = vsub.f32 %v891, %v905
      %v907 = vsub.f32 %v894, %v905
      %v908 = vmul.f32 %v906, 1.442695
      %v909 = vpow.pop %v908
      %v910 = vmul.f32 %v907, 1.442695
      %v911 = vpow.pop %v910
      %v912 = vsel %vm527, %v909, 0.0
      %v913 = vsel %vm527, %v911, 0.0
      %v914 = vadd.f32 %v912, %v913
      %v915 = vrot.slane %v914, 4
      %v916 = vadd.f32 %v914, %v915
      %v917 = vrot.slane %v916, 2
      %v918 = vadd.f32 %v916, %v917
      %v919 = vrot.slane %v918, 1
      %v920 = vadd.f32 %v918, %v919
      %v921 = vrcp.pop %v920
      %v922 = vmul.f32 %v909, %v921
      %v923 = vmul.f32 %v911, %v921
      %v924 = vpack.c.bf16 %v923, %v922
      %v926 = vunpack.c.l.b16 %v470
      %v927 = vpack.c.b16 %v926, %v926
      %v928 = vrot.slane %v927, 2
      %v930 = vsel %vm556, %v928, 0
      %932 = vmatprep.subr.bf16.mxu0 0
      %933 = vmatpush1.bf16.msra.mxu0 0
      %934 = vmatprep.subr.bf16.mxu0 0
      %935 = vmatpush1.bf16.msra.mxu0 0
      %936 = vmatprep.subr.bf16.mxu0 0
      %937 = vmatpush1.bf16.msra.mxu0 0
      %938 = vmatprep.subr.bf16.mxu0 0
      %939 = vmatpush1.bf16.msra.mxu0 0
      %940 = vmatprep.subr.bf16.mxu0 0
      %941 = vmatpush1.bf16.msra.mxu0 0
      %942 = vmatprep.subr.bf16.mxu0 0
      %943 = vmatpush1.bf16.msra.mxu0 0
      %944 = vmatprep.subr.bf16.mxu0 0
      %945 = vmatpush1.bf16.msra.mxu0 0
      %946 = vmatprep.subr.bf16.mxu0 0
      %947 = vmatpush1.bf16.msra.mxu0 %v924
      %948 = vmatprep.subr.bf16.mxu0 0
      %949 = vmatpush2.bf16.msra.mxu0 0
      %950 = vmatprep.subr.bf16.mxu0 0
      %951 = vmatpush2.bf16.msra.mxu0 0
      %952 = vmatprep.subr.bf16.mxu0 0
      %953 = vmatpush2.bf16.msra.mxu0 0
      %954 = vmatprep.subr.bf16.mxu0 0
      %955 = vmatpush2.bf16.msra.mxu0 0
      %956 = vmatprep.subr.bf16.mxu0 0
      %957 = vmatpush2.bf16.msra.mxu0 0
      %958 = vmatprep.subr.bf16.mxu0 0
      %959 = vmatpush2.bf16.msra.mxu0 0
      %960 = vmatprep.subr.bf16.mxu0 0
      %961 = vmatpush2.bf16.msra.mxu0 0
      %962 = vmatprep.subr.bf16.mxu0 0
      %963 = vmatpush2.bf16.msra.mxu0 0
      %964 = vmatprep.mubr.bf16.mxu0 0
      %965 = vmatmul.mubr.bf16.gmra.mxu0 %v930
      %v966 = vpop.f32.mrf.mxu0
      %v967 = vadd.f32 0.0, %v966
      %v968 = vpop.f32.mrf.mxu0
      %v969 = vpop.f32.mrf.mxu0
      %v970 = vpop.f32.mrf.mxu0
      %971 = vdwg.mxu0
      %972 = vrot.lane.b32.xlu0 %v477, 112
      %v973 = vpop.permute.xlu0 %972
      %v975 = vsel %vm478, %v973, 0
      %v978 = vsel %vm482, %v466, 0
      %980 = vmatprep.subr.bf16.mxu0 0
      %981 = vmatpush1.bf16.msra.mxu0 0
      %982 = vmatprep.subr.bf16.mxu0 0
      %983 = vmatpush1.bf16.msra.mxu0 0
      %984 = vmatprep.subr.bf16.mxu0 0
      %985 = vmatpush1.bf16.msra.mxu0 0
      %986 = vmatprep.subr.bf16.mxu0 0
      %987 = vmatpush1.bf16.msra.mxu0 0
      %988 = vmatprep.subr.bf16.mxu0 0
      %989 = vmatpush1.bf16.msra.mxu0 0
      %990 = vmatprep.subr.bf16.mxu0 0
      %991 = vmatpush1.bf16.msra.mxu0 0
      %992 = vmatprep.subr.bf16.mxu0 0
      %993 = vmatpush1.bf16.msra.mxu0 0
      %994 = vmatprep.subr.bf16.mxu0 0
      %995 = vmatpush1.bf16.msra.mxu0 %v978
      %996 = vmatprep.subr.bf16.mxu0 0
      %997 = vmatpush2.bf16.msra.mxu0 0
      %998 = vmatprep.subr.bf16.mxu0 0
      %999 = vmatpush2.bf16.msra.mxu0 0
      %1000 = vmatprep.subr.bf16.mxu0 0
      %1001 = vmatpush2.bf16.msra.mxu0 0
      %1002 = vmatprep.subr.bf16.mxu0 0
      %1003 = vmatpush2.bf16.msra.mxu0 0
      %1004 = vmatprep.subr.bf16.mxu0 0
      %1005 = vmatpush2.bf16.msra.mxu0 0
      %1006 = vmatprep.subr.bf16.mxu0 0
      %1007 = vmatpush2.bf16.msra.mxu0 0
      %1008 = vmatprep.subr.bf16.mxu0 0
      %1009 = vmatpush2.bf16.msra.mxu0 0
      %1010 = vmatprep.subr.bf16.mxu0 0
      %1011 = vmatpush2.bf16.msra.mxu0 0
      %1012 = vmatprep.mubr.bf16.mxu0 0
      %1013 = vmatmul.mubr.bf16.gmra.mxu0 %v975
      %v1014 = vpop.f32.mrf.mxu0
      %v1015 = vadd.f32 0.0, %v1014
      %v1016 = vpop.f32.mrf.mxu0
      %v1017 = vpop.f32.mrf.mxu0
      %v1018 = vadd.f32 0.0, %v1017
      %v1019 = vpop.f32.mrf.mxu0
      %1020 = vdwg.mxu0
      %v1021 = vsel %vm527, %v1015, -inf
      %v1022 = vsel %vm527, %v1018, -inf
      %v1023 = vmax.f32 %v1021, %v1022
      %v1024 = vrot.slane %v1023, 4
      %v1025 = vmax.f32 %v1023, %v1024
      %v1026 = vrot.slane %v1025, 2
      %v1027 = vmax.f32 %v1025, %v1026
      %v1028 = vrot.slane %v1027, 1
      %v1029 = vmax.f32 %v1027, %v1028
      %v1030 = vsub.f32 %v1015, %v1029
      %v1031 = vsub.f32 %v1018, %v1029
      %v1032 = vmul.f32 %v1030, 1.442695
      %v1033 = vpow.pop %v1032
      %v1034 = vmul.f32 %v1031, 1.442695
      %v1035 = vpow.pop %v1034
      %v1036 = vsel %vm527, %v1033, 0.0
      %v1037 = vsel %vm527, %v1035, 0.0
      %v1038 = vadd.f32 %v1036, %v1037
      %v1039 = vrot.slane %v1038, 4
      %v1040 = vadd.f32 %v1038, %v1039
      %v1041 = vrot.slane %v1040, 2
      %v1042 = vadd.f32 %v1040, %v1041
      %v1043 = vrot.slane %v1042, 1
      %v1044 = vadd.f32 %v1042, %v1043
      %v1045 = vrcp.pop %v1044
      %v1046 = vmul.f32 %v1033, %v1045
      %v1047 = vmul.f32 %v1035, %v1045
      %v1048 = vpack.c.bf16 %v1047, %v1046
      %v1050 = vsel %vm556, %v471, 0
      %1052 = vmatprep.subr.bf16.mxu0 0
      %1053 = vmatpush1.bf16.msra.mxu0 0
      %1054 = vmatprep.subr.bf16.mxu0 0
      %1055 = vmatpush1.bf16.msra.mxu0 0
      %1056 = vmatprep.subr.bf16.mxu0 0
      %1057 = vmatpush1.bf16.msra.mxu0 0
      %1058 = vmatprep.subr.bf16.mxu0 0
      %1059 = vmatpush1.bf16.msra.mxu0 0
      %1060 = vmatprep.subr.bf16.mxu0 0
      %1061 = vmatpush1.bf16.msra.mxu0 0
      %1062 = vmatprep.subr.bf16.mxu0 0
      %1063 = vmatpush1.bf16.msra.mxu0 0
      %1064 = vmatprep.subr.bf16.mxu0 0
      %1065 = vmatpush1.bf16.msra.mxu0 0
      %1066 = vmatprep.subr.bf16.mxu0 0
      %1067 = vmatpush1.bf16.msra.mxu0 %v1048
      %1068 = vmatprep.subr.bf16.mxu0 0
      %1069 = vmatpush2.bf16.msra.mxu0 0
      %1070 = vmatprep.subr.bf16.mxu0 0
      %1071 = vmatpush2.bf16.msra.mxu0 0
      %1072 = vmatprep.subr.bf16.mxu0 0
      %1073 = vmatpush2.bf16.msra.mxu0 0
      %1074 = vmatprep.subr.bf16.mxu0 0
      %1075 = vmatpush2.bf16.msra.mxu0 0
      %1076 = vmatprep.subr.bf16.mxu0 0
      %1077 = vmatpush2.bf16.msra.mxu0 0
      %1078 = vmatprep.subr.bf16.mxu0 0
      %1079 = vmatpush2.bf16.msra.mxu0 0
      %1080 = vmatprep.subr.bf16.mxu0 0
      %1081 = vmatpush2.bf16.msra.mxu0 0
      %1082 = vmatprep.subr.bf16.mxu0 0
      %1083 = vmatpush2.bf16.msra.mxu0 0
      %1084 = vmatprep.mubr.bf16.mxu0 0
      %1085 = vmatmul.mubr.bf16.gmra.mxu0 %v1050
      %v1086 = vpop.f32.mrf.mxu0
      %v1087 = vadd.f32 0.0, %v1086
      %v1088 = vpop.f32.mrf.mxu0
      %v1089 = vpop.f32.mrf.mxu0
      %v1090 = vpop.f32.mrf.mxu0
      %1091 = vdwg.mxu0
      %1092 = vrot.lane.b32.xlu0 %v477, 108
      %v1093 = vpop.permute.xlu0 %1092
      %v1095 = vrot.slane %v466, 2
      %v1097 = vsel %vm478, %v1093, 0
      %v1100 = vsel %vm482, %v1095, 0
      %1102 = vmatprep.subr.bf16.mxu0 0
      %1103 = vmatpush1.bf16.msra.mxu0 0
      %1104 = vmatprep.subr.bf16.mxu0 0
      %1105 = vmatpush1.bf16.msra.mxu0 0
      %1106 = vmatprep.subr.bf16.mxu0 0
      %1107 = vmatpush1.bf16.msra.mxu0 0
      %1108 = vmatprep.subr.bf16.mxu0 0
      %1109 = vmatpush1.bf16.msra.mxu0 0
      %1110 = vmatprep.subr.bf16.mxu0 0
      %1111 = vmatpush1.bf16.msra.mxu0 0
      %1112 = vmatprep.subr.bf16.mxu0 0
      %1113 = vmatpush1.bf16.msra.mxu0 0
      %1114 = vmatprep.subr.bf16.mxu0 0
      %1115 = vmatpush1.bf16.msra.mxu0 0
      %1116 = vmatprep.subr.bf16.mxu0 0
      %1117 = vmatpush1.bf16.msra.mxu0 %v1100
      %1118 = vmatprep.subr.bf16.mxu0 0
      %1119 = vmatpush2.bf16.msra.mxu0 0
      %1120 = vmatprep.subr.bf16.mxu0 0
      %1121 = vmatpush2.bf16.msra.mxu0 0
      %1122 = vmatprep.subr.bf16.mxu0 0
      %1123 = vmatpush2.bf16.msra.mxu0 0
      %1124 = vmatprep.subr.bf16.mxu0 0
      %1125 = vmatpush2.bf16.msra.mxu0 0
      %1126 = vmatprep.subr.bf16.mxu0 0
      %1127 = vmatpush2.bf16.msra.mxu0 0
      %1128 = vmatprep.subr.bf16.mxu0 0
      %1129 = vmatpush2.bf16.msra.mxu0 0
      %1130 = vmatprep.subr.bf16.mxu0 0
      %1131 = vmatpush2.bf16.msra.mxu0 0
      %1132 = vmatprep.subr.bf16.mxu0 0
      %1133 = vmatpush2.bf16.msra.mxu0 0
      %1134 = vmatprep.mubr.bf16.mxu0 0
      %1135 = vmatmul.mubr.bf16.gmra.mxu0 %v1097
      %v1136 = vpop.f32.mrf.mxu0
      %v1137 = vadd.f32 0.0, %v1136
      %v1138 = vpop.f32.mrf.mxu0
      %v1139 = vpop.f32.mrf.mxu0
      %v1140 = vadd.f32 0.0, %v1139
      %v1141 = vpop.f32.mrf.mxu0
      %1142 = vdwg.mxu0
      %v1143 = vsel %vm527, %v1137, -inf
      %v1144 = vsel %vm527, %v1140, -inf
      %v1145 = vmax.f32 %v1143, %v1144
      %v1146 = vrot.slane %v1145, 4
      %v1147 = vmax.f32 %v1145, %v1146
      %v1148 = vrot.slane %v1147, 2
      %v1149 = vmax.f32 %v1147, %v1148
      %v1150 = vrot.slane %v1149, 1
      %v1151 = vmax.f32 %v1149, %v1150
      %v1152 = vsub.f32 %v1137, %v1151
      %v1153 = vsub.f32 %v1140, %v1151
      %v1154 = vmul.f32 %v1152, 1.442695
      %v1155 = vpow.pop %v1154
      %v1156 = vmul.f32 %v1153, 1.442695
      %v1157 = vpow.pop %v1156
      %v1158 = vsel %vm527, %v1155, 0.0
      %v1159 = vsel %vm527, %v1157, 0.0
      %v1160 = vadd.f32 %v1158, %v1159
      %v1161 = vrot.slane %v1160, 4
      %v1162 = vadd.f32 %v1160, %v1161
      %v1163 = vrot.slane %v1162, 2
      %v1164 = vadd.f32 %v1162, %v1163
      %v1165 = vrot.slane %v1164, 1
      %v1166 = vadd.f32 %v1164, %v1165
      %v1167 = vrcp.pop %v1166
      %v1168 = vmul.f32 %v1155, %v1167
      %v1169 = vmul.f32 %v1157, %v1167
      %v1170 = vpack.c.bf16 %v1169, %v1168
      %v1172 = vunpack.c.l.b16 %v471
      %v1173 = vpack.c.b16 %v1172, %v1172
      %v1174 = vrot.slane %v1173, 2
      %v1176 = vsel %vm556, %v1174, 0
      %1178 = vmatprep.subr.bf16.mxu0 0
      %1179 = vmatpush1.bf16.msra.mxu0 0
      %1180 = vmatprep.subr.bf16.mxu0 0
      %1181 = vmatpush1.bf16.msra.mxu0 0
      %1182 = vmatprep.subr.bf16.mxu0 0
      %1183 = vmatpush1.bf16.msra.mxu0 0
      %1184 = vmatprep.subr.bf16.mxu0 0
      %1185 = vmatpush1.bf16.msra.mxu0 0
      %1186 = vmatprep.subr.bf16.mxu0 0
      %1187 = vmatpush1.bf16.msra.mxu0 0
      %1188 = vmatprep.subr.bf16.mxu0 0
      %1189 = vmatpush1.bf16.msra.mxu0 0
      %1190 = vmatprep.subr.bf16.mxu0 0
      %1191 = vmatpush1.bf16.msra.mxu0 0
      %1192 = vmatprep.subr.bf16.mxu0 0
      %1193 = vmatpush1.bf16.msra.mxu0 %v1170
      %1194 = vmatprep.subr.bf16.mxu0 0
      %1195 = vmatpush2.bf16.msra.mxu0 0
      %1196 = vmatprep.subr.bf16.mxu0 0
      %1197 = vmatpush2.bf16.msra.mxu0 0
      %1198 = vmatprep.subr.bf16.mxu0 0
      %1199 = vmatpush2.bf16.msra.mxu0 0
      %1200 = vmatprep.subr.bf16.mxu0 0
      %1201 = vmatpush2.bf16.msra.mxu0 0
      %1202 = vmatprep.subr.bf16.mxu0 0
      %1203 = vmatpush2.bf16.msra.mxu0 0
      %1204 = vmatprep.subr.bf16.mxu0 0
      %1205 = vmatpush2.bf16.msra.mxu0 0
      %1206 = vmatprep.subr.bf16.mxu0 0
      %1207 = vmatpush2.bf16.msra.mxu0 0
      %1208 = vmatprep.subr.bf16.mxu0 0
      %1209 = vmatpush2.bf16.msra.mxu0 0
      %1210 = vmatprep.mubr.bf16.mxu0 0
      %1211 = vmatmul.mubr.bf16.gmra.mxu0 %v1176
      %v1212 = vpop.f32.mrf.mxu0
      %v1213 = vadd.f32 0.0, %v1212
      %v1214 = vpop.f32.mrf.mxu0
      %v1215 = vpop.f32.mrf.mxu0
      %v1216 = vpop.f32.mrf.mxu0
      %1217 = vdwg.mxu0
      %1218 = vrot.lane.b32.xlu0 %v477, 104
      %v1219 = vpop.permute.xlu0 %1218
      %v1220 = vrot.slane %v466, 4
      %v1222 = vsel %vm478, %v1219, 0
      %v1225 = vsel %vm482, %v1220, 0
      %1227 = vmatprep.subr.bf16.mxu0 0
      %1228 = vmatpush1.bf16.msra.mxu0 0
      %1229 = vmatprep.subr.bf16.mxu0 0
      %1230 = vmatpush1.bf16.msra.mxu0 0
      %1231 = vmatprep.subr.bf16.mxu0 0
      %1232 = vmatpush1.bf16.msra.mxu0 0
      %1233 = vmatprep.subr.bf16.mxu0 0
      %1234 = vmatpush1.bf16.msra.mxu0 0
      %1235 = vmatprep.subr.bf16.mxu0 0
      %1236 = vmatpush1.bf16.msra.mxu0 0
      %1237 = vmatprep.subr.bf16.mxu0 0
      %1238 = vmatpush1.bf16.msra.mxu0 0
      %1239 = vmatprep.subr.bf16.mxu0 0
      %1240 = vmatpush1.bf16.msra.mxu0 0
      %1241 = vmatprep.subr.bf16.mxu0 0
      %1242 = vmatpush1.bf16.msra.mxu0 %v1225
      %1243 = vmatprep.subr.bf16.mxu0 0
      %1244 = vmatpush2.bf16.msra.mxu0 0
      %1245 = vmatprep.subr.bf16.mxu0 0
      %1246 = vmatpush2.bf16.msra.mxu0 0
      %1247 = vmatprep.subr.bf16.mxu0 0
      %1248 = vmatpush2.bf16.msra.mxu0 0
      %1249 = vmatprep.subr.bf16.mxu0 0
      %1250 = vmatpush2.bf16.msra.mxu0 0
      %1251 = vmatprep.subr.bf16.mxu0 0
      %1252 = vmatpush2.bf16.msra.mxu0 0
      %1253 = vmatprep.subr.bf16.mxu0 0
      %1254 = vmatpush2.bf16.msra.mxu0 0
      %1255 = vmatprep.subr.bf16.mxu0 0
      %1256 = vmatpush2.bf16.msra.mxu0 0
      %1257 = vmatprep.subr.bf16.mxu0 0
      %1258 = vmatpush2.bf16.msra.mxu0 0
      %1259 = vmatprep.mubr.bf16.mxu0 0
      %1260 = vmatmul.mubr.bf16.gmra.mxu0 %v1222
      %v1261 = vpop.f32.mrf.mxu0
      %v1262 = vadd.f32 0.0, %v1261
      %v1263 = vpop.f32.mrf.mxu0
      %v1264 = vpop.f32.mrf.mxu0
      %v1265 = vadd.f32 0.0, %v1264
      %v1266 = vpop.f32.mrf.mxu0
      %1267 = vdwg.mxu0
      %v1268 = vsel %vm527, %v1262, -inf
      %v1269 = vsel %vm527, %v1265, -inf
      %v1270 = vmax.f32 %v1268, %v1269
      %v1271 = vrot.slane %v1270, 4
      %v1272 = vmax.f32 %v1270, %v1271
      %v1273 = vrot.slane %v1272, 2
      %v1274 = vmax.f32 %v1272, %v1273
      %v1275 = vrot.slane %v1274, 1
      %v1276 = vmax.f32 %v1274, %v1275
      %v1277 = vsub.f32 %v1262, %v1276
      %v1278 = vsub.f32 %v1265, %v1276
      %v1279 = vmul.f32 %v1277, 1.442695
      %v1280 = vpow.pop %v1279
      %v1281 = vmul.f32 %v1278, 1.442695
      %v1282 = vpow.pop %v1281
      %v1283 = vsel %vm527, %v1280, 0.0
      %v1284 = vsel %vm527, %v1282, 0.0
      %v1285 = vadd.f32 %v1283, %v1284
      %v1286 = vrot.slane %v1285, 4
      %v1287 = vadd.f32 %v1285, %v1286
      %v1288 = vrot.slane %v1287, 2
      %v1289 = vadd.f32 %v1287, %v1288
      %v1290 = vrot.slane %v1289, 1
      %v1291 = vadd.f32 %v1289, %v1290
      %v1292 = vrcp.pop %v1291
      %v1293 = vmul.f32 %v1280, %v1292
      %v1294 = vmul.f32 %v1282, %v1292
      %v1295 = vpack.c.bf16 %v1294, %v1293
      %v1297 = vsel %vm556, %v472, 0
      %1299 = vmatprep.subr.bf16.mxu0 0
      %1300 = vmatpush1.bf16.msra.mxu0 0
      %1301 = vmatprep.subr.bf16.mxu0 0
      %1302 = vmatpush1.bf16.msra.mxu0 0
      %1303 = vmatprep.subr.bf16.mxu0 0
      %1304 = vmatpush1.bf16.msra.mxu0 0
      %1305 = vmatprep.subr.bf16.mxu0 0
      %1306 = vmatpush1.bf16.msra.mxu0 0
      %1307 = vmatprep.subr.bf16.mxu0 0
      %1308 = vmatpush1.bf16.msra.mxu0 0
      %1309 = vmatprep.subr.bf16.mxu0 0
      %1310 = vmatpush1.bf16.msra.mxu0 0
      %1311 = vmatprep.subr.bf16.mxu0 0
      %1312 = vmatpush1.bf16.msra.mxu0 0
      %1313 = vmatprep.subr.bf16.mxu0 0
      %1314 = vmatpush1.bf16.msra.mxu0 %v1295
      %1315 = vmatprep.subr.bf16.mxu0 0
      %1316 = vmatpush2.bf16.msra.mxu0 0
      %1317 = vmatprep.subr.bf16.mxu0 0
      %1318 = vmatpush2.bf16.msra.mxu0 0
      %1319 = vmatprep.subr.bf16.mxu0 0
      %1320 = vmatpush2.bf16.msra.mxu0 0
      %1321 = vmatprep.subr.bf16.mxu0 0
      %1322 = vmatpush2.bf16.msra.mxu0 0
      %1323 = vmatprep.subr.bf16.mxu0 0
      %1324 = vmatpush2.bf16.msra.mxu0 0
      %1325 = vmatprep.subr.bf16.mxu0 0
      %1326 = vmatpush2.bf16.msra.mxu0 0
      %1327 = vmatprep.subr.bf16.mxu0 0
      %1328 = vmatpush2.bf16.msra.mxu0 0
      %1329 = vmatprep.subr.bf16.mxu0 0
      %1330 = vmatpush2.bf16.msra.mxu0 0
      %1331 = vmatprep.mubr.bf16.mxu0 0
      %1332 = vmatmul.mubr.bf16.gmra.mxu0 %v1297
      %v1333 = vpop.f32.mrf.mxu0
      %v1334 = vadd.f32 0.0, %v1333
      %v1335 = vpop.f32.mrf.mxu0
      %v1336 = vpop.f32.mrf.mxu0
      %v1337 = vpop.f32.mrf.mxu0
      %1338 = vdwg.mxu0
      %1339 = vrot.lane.b32.xlu0 %v477, 100
      %v1340 = vpop.permute.xlu0 %1339
      %v1341 = vrot.slane %v466, 6
      %v1343 = vsel %vm478, %v1340, 0
      %v1346 = vsel %vm482, %v1341, 0
      %1348 = vmatprep.subr.bf16.mxu0 0
      %1349 = vmatpush1.bf16.msra.mxu0 0
      %1350 = vmatprep.subr.bf16.mxu0 0
      %1351 = vmatpush1.bf16.msra.mxu0 0
      %1352 = vmatprep.subr.bf16.mxu0 0
      %1353 = vmatpush1.bf16.msra.mxu0 0
      %1354 = vmatprep.subr.bf16.mxu0 0
      %1355 = vmatpush1.bf16.msra.mxu0 0
      %1356 = vmatprep.subr.bf16.mxu0 0
      %1357 = vmatpush1.bf16.msra.mxu0 0
      %1358 = vmatprep.subr.bf16.mxu0 0
      %1359 = vmatpush1.bf16.msra.mxu0 0
      %1360 = vmatprep.subr.bf16.mxu0 0
      %1361 = vmatpush1.bf16.msra.mxu0 0
      %1362 = vmatprep.subr.bf16.mxu0 0
      %1363 = vmatpush1.bf16.msra.mxu0 %v1346
      %1364 = vmatprep.subr.bf16.mxu0 0
      %1365 = vmatpush2.bf16.msra.mxu0 0
      %1366 = vmatprep.subr.bf16.mxu0 0
      %1367 = vmatpush2.bf16.msra.mxu0 0
      %1368 = vmatprep.subr.bf16.mxu0 0
      %1369 = vmatpush2.bf16.msra.mxu0 0
      %1370 = vmatprep.subr.bf16.mxu0 0
      %1371 = vmatpush2.bf16.msra.mxu0 0
      %1372 = vmatprep.subr.bf16.mxu0 0
      %1373 = vmatpush2.bf16.msra.mxu0 0
      %1374 = vmatprep.subr.bf16.mxu0 0
      %1375 = vmatpush2.bf16.msra.mxu0 0
      %1376 = vmatprep.subr.bf16.mxu0 0
      %1377 = vmatpush2.bf16.msra.mxu0 0
      %1378 = vmatprep.subr.bf16.mxu0 0
      %1379 = vmatpush2.bf16.msra.mxu0 0
      %1380 = vmatprep.mubr.bf16.mxu0 0
      %1381 = vmatmul.mubr.bf16.gmra.mxu0 %v1343
      %v1382 = vpop.f32.mrf.mxu0
      %v1383 = vadd.f32 0.0, %v1382
      %v1384 = vpop.f32.mrf.mxu0
      %v1385 = vpop.f32.mrf.mxu0
      %v1386 = vadd.f32 0.0, %v1385
      %v1387 = vpop.f32.mrf.mxu0
      %1388 = vdwg.mxu0
      %v1389 = vsel %vm527, %v1383, -inf
      %v1390 = vsel %vm527, %v1386, -inf
      %v1391 = vmax.f32 %v1389, %v1390
      %v1392 = vrot.slane %v1391, 4
      %v1393 = vmax.f32 %v1391, %v1392
      %v1394 = vrot.slane %v1393, 2
      %v1395 = vmax.f32 %v1393, %v1394
      %v1396 = vrot.slane %v1395, 1
      %v1397 = vmax.f32 %v1395, %v1396
      %v1398 = vsub.f32 %v1383, %v1397
      %v1399 = vsub.f32 %v1386, %v1397
      %v1400 = vmul.f32 %v1398, 1.442695
      %v1401 = vpow.pop %v1400
      %v1402 = vmul.f32 %v1399, 1.442695
      %v1403 = vpow.pop %v1402
      %v1404 = vsel %vm527, %v1401, 0.0
      %v1405 = vsel %vm527, %v1403, 0.0
      %v1406 = vadd.f32 %v1404, %v1405
      %v1407 = vrot.slane %v1406, 4
      %v1408 = vadd.f32 %v1406, %v1407
      %v1409 = vrot.slane %v1408, 2
      %v1410 = vadd.f32 %v1408, %v1409
      %v1411 = vrot.slane %v1410, 1
      %v1412 = vadd.f32 %v1410, %v1411
      %v1413 = vrcp.pop %v1412
      %v1414 = vmul.f32 %v1401, %v1413
      %v1415 = vmul.f32 %v1403, %v1413
      %v1416 = vpack.c.bf16 %v1415, %v1414
      %v1418 = vunpack.c.l.b16 %v472
      %v1419 = vpack.c.b16 %v1418, %v1418
      %v1420 = vrot.slane %v1419, 2
      %v1422 = vsel %vm556, %v1420, 0
      %1424 = vmatprep.subr.bf16.mxu0 0
      %1425 = vmatpush1.bf16.msra.mxu0 0
      %1426 = vmatprep.subr.bf16.mxu0 0
      %1427 = vmatpush1.bf16.msra.mxu0 0
      %1428 = vmatprep.subr.bf16.mxu0 0
      %1429 = vmatpush1.bf16.msra.mxu0 0
      %1430 = vmatprep.subr.bf16.mxu0 0
      %1431 = vmatpush1.bf16.msra.mxu0 0
      %1432 = vmatprep.subr.bf16.mxu0 0
      %1433 = vmatpush1.bf16.msra.mxu0 0
      %1434 = vmatprep.subr.bf16.mxu0 0
      %1435 = vmatpush1.bf16.msra.mxu0 0
      %1436 = vmatprep.subr.bf16.mxu0 0
      %1437 = vmatpush1.bf16.msra.mxu0 0
      %1438 = vmatprep.subr.bf16.mxu0 0
      %1439 = vmatpush1.bf16.msra.mxu0 %v1416
      %1440 = vmatprep.subr.bf16.mxu0 0
      %1441 = vmatpush2.bf16.msra.mxu0 0
      %1442 = vmatprep.subr.bf16.mxu0 0
      %1443 = vmatpush2.bf16.msra.mxu0 0
      %1444 = vmatprep.subr.bf16.mxu0 0
      %1445 = vmatpush2.bf16.msra.mxu0 0
      %1446 = vmatprep.subr.bf16.mxu0 0
      %1447 = vmatpush2.bf16.msra.mxu0 0
      %1448 = vmatprep.subr.bf16.mxu0 0
      %1449 = vmatpush2.bf16.msra.mxu0 0
      %1450 = vmatprep.subr.bf16.mxu0 0
      %1451 = vmatpush2.bf16.msra.mxu0 0
      %1452 = vmatprep.subr.bf16.mxu0 0
      %1453 = vmatpush2.bf16.msra.mxu0 0
      %1454 = vmatprep.subr.bf16.mxu0 0
      %1455 = vmatpush2.bf16.msra.mxu0 0
      %1456 = vmatprep.mubr.bf16.mxu0 0
      %1457 = vmatmul.mubr.bf16.gmra.mxu0 %v1422
      %v1458 = vpop.f32.mrf.mxu0
      %v1459 = vadd.f32 0.0, %v1458
      %v1460 = vpop.f32.mrf.mxu0
      %v1461 = vpop.f32.mrf.mxu0
      %v1462 = vpop.f32.mrf.mxu0
      %1463 = vdwg.mxu0
      %v1465 = vrot.slane %v721, 4
      %v1468 = vrot.slane %v967, 4
      %v1471 = vrot.slane %v1213, 4
      %v1474 = vrot.slane %v1459, 4
      %vm1476 = vcmask 1043456
      %v1477 = vsel %vm1476, %v595, %v1465
      %v1478 = vsel %vm1476, %v842, %v1468
      %v1479 = vsel %vm1476, %v1087, %v1471
      %v1480 = vsel %vm1476, %v1334, %v1474
      %v1481 = vpack.c.bf16 %v1478, %v1477
      %v1482 = vpack.c.bf16 %v1480, %v1479
      %v1483 = vld [vmem:[%s5] sm:$0xf]
      %v1484 = vld [vmem:[%s5 + $0x4] sm:$0xf]
      %v1485 = vld [vmem:[%s5 + $0x8] sm:$0xf]
      %v1486 = vld [vmem:[%s5 + $0xc] sm:$0xf]
      %v1487 = vld [vmem:[%s6] sm:$0xff]
      %v1488 = vld [vmem:[%s6 + $0x8] sm:$0xff]
      %v1489 = vld [vmem:[%s6 + $0x10] sm:$0xff]
      %v1490 = vld [vmem:[%s6 + $0x18] sm:$0xff]
      %1492 = vset.pattern.permute.xlu0 0
      %1493 = vperm.xlu0 %1492, %v1487
      %v1494 = vpop.permute.xlu0 %1493
      %1497 = vset.pattern.permute.xlu0 0
      %1498 = vperm.xlu0 %1497, %v1488
      %v1499 = vpop.permute.xlu0 %1498
      %1502 = vset.pattern.permute.xlu0 0
      %1503 = vperm.xlu0 %1502, %v1489
      %v1504 = vpop.permute.xlu0 %1503
      %1507 = vset.pattern.permute.xlu0 0
      %1508 = vperm.xlu0 %1507, %v1490
      %v1509 = vpop.permute.xlu0 %1508
      %v1515 = vunpack.c.l.b16 %v1483
      %v1516 = vunpack.c.l.b16 %v1484
      %v1517 = vunpack.c.l.b16 %v1485
      %v1518 = vunpack.c.l.b16 %v1486
      %v1519 = vpack.c.b16 %v1516, %v1515
      %v1520 = vpack.c.b16 %v1518, %v1517
      %v1522 = vsel %vm405, %v1519, 0
      %v1525 = vsel %vm405, %v1520, 0
      %1527 = vmatprep.subr.bf16.mxu0 0
      %1528 = vmatpush1.bf16.msra.mxu0 0
      %1529 = vmatprep.subr.bf16.mxu0 0
      %1530 = vmatpush1.bf16.msra.mxu0 0
      %1531 = vmatprep.subr.bf16.mxu0 0
      %1532 = vmatpush1.bf16.msra.mxu0 0
      %1533 = vmatprep.subr.bf16.mxu0 0
      %1534 = vmatpush1.bf16.msra.mxu0 0
      %1535 = vmatprep.subr.bf16.mxu0 0
      %1536 = vmatpush1.bf16.msra.mxu0 0
      %1537 = vmatprep.subr.bf16.mxu0 0
      %1538 = vmatpush1.bf16.msra.mxu0 0
      %1539 = vmatprep.subr.bf16.mxu0 0
      %1540 = vmatpush1.bf16.msra.mxu0 %v1482
      %1541 = vmatprep.subr.bf16.mxu0 0
      %1542 = vmatpush1.bf16.msra.mxu0 %v1481
      %1543 = vmatprep.subr.bf16.mxu0 0
      %1544 = vmatpush2.bf16.msra.mxu0 0
      %1545 = vmatprep.subr.bf16.mxu0 0
      %1546 = vmatpush2.bf16.msra.mxu0 0
      %1547 = vmatprep.subr.bf16.mxu0 0
      %1548 = vmatpush2.bf16.msra.mxu0 0
      %1549 = vmatprep.subr.bf16.mxu0 0
      %1550 = vmatpush2.bf16.msra.mxu0 0
      %1551 = vmatprep.subr.bf16.mxu0 0
      %1552 = vmatpush2.bf16.msra.mxu0 0
      %1553 = vmatprep.subr.bf16.mxu0 0
      %1554 = vmatpush2.bf16.msra.mxu0 0
      %1555 = vmatprep.subr.bf16.mxu0 0
      %1556 = vmatpush2.bf16.msra.mxu0 0
      %1557 = vmatprep.subr.bf16.mxu0 0
      %1558 = vmatpush2.bf16.msra.mxu0 0
      %1559 = vmatprep.mubr.bf16.mxu0 0
      %1560 = vmatmul.mubr.bf16.gmra.mxu0 %v1522
      %v1561 = vpop.f32.mrf.mxu0
      %v1562 = vadd.f32 %v1494, %v1561
      %v1563 = vpop.f32.mrf.mxu0
      %v1564 = vpop.f32.mrf.mxu0
      %v1565 = vadd.f32 %v1499, %v1564
      %v1566 = vpop.f32.mrf.mxu0
      %1567 = vmatprep.mubr.bf16.mxu0 0
      %1568 = vmatmul.mubr.bf16.gmra.mxu0 %v1525
      %v1569 = vpop.f32.mrf.mxu0
      %v1570 = vadd.f32 %v1504, %v1569
      %v1571 = vpop.f32.mrf.mxu0
      %v1572 = vpop.f32.mrf.mxu0
      %v1573 = vadd.f32 %v1509, %v1572
      %v1574 = vpop.f32.mrf.mxu0
      %1575 = vdwg.mxu0
      %1576 = vst.msk [vmem:[%s349] sm:$0xff] %vm527, %v1562
      %1577 = vst.msk [vmem:[%s349 + $0x8] sm:$0xff] %vm527, %v1565
      %1578 = vst.msk [vmem:[%s349 + $0x10] sm:$0xff] %vm527, %v1570
      %1579 = vst.msk [vmem:[%s349 + $0x18] sm:$0xff] %vm527, %v1573
      %p1580 = scmp.lt.s32.totalorder %s22, 1
      %s1581 = scalar_select %p1580, %s22, 1
      %p1582 = scmp.lt.s32.totalorder %s23, 0
      %s1583 = scalar_select %p1582, %s23, 0
      %s1584 = smul.addr %s1581, 4
      %s1585 = sadd.s32 %s1583, %s1584
      %s1586 = smul.addr %s1585, 8
      %s1587 = scalar_lea.vmem %s7, %s1586
      // Predicated region
      $region49: #{efficient_mha.3} parent=47 // pred_check
        %p1588 = pneg %p214
      $region50: #{efficient_mha.3} parent=47 // pred_check_branch
        %1590 = sbr.rel (%p1588) target = $region52
      $region51: #{efficient_mha.3} parent=47 // pred_region
        _
      $region52: #{efficient_mha.3} parent=47 // pred_fallthru
        _
    $region48: #{efficient_mha.3} parent=5 // pred_fallthru
      _
    %p1591 = scmp.le.s32.totalorder 2, %s13
    // Predicated region
    $region53: #{efficient_mha.3} parent=5 // pred_check
      %p1592 = pneg %p1591
    $region54: #{efficient_mha.3} parent=5 // pred_check_branch
      %1594 = sbr.rel (%p1592) target = $region56
    $region55: #{efficient_mha.3} parent=5 // pred_region
      %s1595 = ssub.s32 %s13, 2
      // Predicated region
      $region57: #{efficient_mha.3} parent=55 // pred_check
        %p1596 = pneg %p220
      $region58: #{efficient_mha.3} parent=55 // pred_check_branch
        %1598 = sbr.rel (%p1596) target = $region60
      $region59: #{efficient_mha.3} parent=55 // pred_region
        %p1599 = scmp.lt.s32.totalorder %s24, 1
        %s1600 = scalar_select %p1599, %s24, 1
        %p1601 = scmp.lt.s32.totalorder %s25, 0
        %s1602 = scalar_select %p1601, %s25, 0
        %s1603 = smul.addr %s1600, 4
        %s1604 = sadd.s32 %s1602, %s1603
        %s1605 = smul.addr %s1604, 8
        %s1606 = scalar_lea.vmem %s7, %s1605
      $region60: #{efficient_mha.3} parent=55 // pred_fallthru
        _
    $region56: #{efficient_mha.3} parent=5 // pred_fallthru
      _
  $region6: #{efficient_mha.3} parent=0 // loop_footer
    %s17 = sadd.s32 1, %s13
  $region7: #{efficient_mha.3} parent=0 // loop_footer_branch
    %12 = sbr.rel target = $region3
  $region8: #{efficient_mha.3} parent=0 // loop_exit
    _

</llo_original>
